<compile_context>
chip_gen: v6e
topology: v6e:2x2x1
jax: 0.10.0
libtpu: 0.0.40
codegen_flags: <defaults>
</compile_context>

<pallas_src>
import math

import jax
import jax.numpy as jnp
import numpy as np
from jax.experimental import pallas as pl
from jax.experimental.pallas import tpu as pltpu

# ------------------------------ configuration -------------------------------
B = 2                       # batch
C_IN = 3                    # input channels (hard-coded 3 in the reference conv)
IMG_H = 32
IMG_W = 32
SCALE = 4
HID = 32                    # hidden_dim
RS = IMG_H // SCALE         # resize target (reference uses img_h for BOTH dims) = 8
H1 = RS // 2                # spatial after conv1 (k2,s2) = 4
C1 = 4
H2 = H1 // 2                # spatial after conv2 (k2,s2) = 2
C2 = 16
NTOK = H2 * H2              # output tokens = 4
F0 = C_IN * IMG_H * IMG_W   # 3072
F1 = H1 * H1 * C1           # 64   (flat layout: p1*C1 + c)
F2 = H2 * H2 * C2           # 64   (flat layout: p2*C2 + c)
F3 = NTOK * HID             # 128  (flat layout: p2*HID + c)
EPS = 1e-6                  # LayerNorm2d eps (SAM-style)


# ------------------------------ shared math ---------------------------------
def _gelu(x):
    c = math.sqrt(2.0 / math.pi)
    return 0.5 * x * (1.0 + jnp.tanh(c * (x + 0.044715 * x * x * x)))


# -------------------------------- kernel ------------------------------------
def _group_ln(z, m, gamma, beta):
    # channel LayerNorm on the flat layout: m is a block-diagonal group-mean
    # matrix, so z@m broadcasts each group's mean back over the group.
    mu = jnp.dot(z, m, preferred_element_type=jnp.float32)
    var = jnp.dot(z * z, m, preferred_element_type=jnp.float32) - mu * mu
    return (z - mu) * jax.lax.rsqrt(var + EPS) * gamma + beta


def _encoder_kernel(x_ref, b1_ref, a2_ref, a3_ref, mn_ref, vec_ref, out_ref):
    x = x_ref[...]                       # (B, F0)   f32
    vec = vec_ref[...]                   # (8, 128)  f32  packed bias/LN slab
    b1t, g1t, be1t = vec[0:1, :F1], vec[1:2, :F1], vec[2:3, :F1]
    b2t, g2t, be2t = vec[3:4, :F2], vec[4:5, :F2], vec[5:6, :F2]
    b3t = vec[6:7, :F3]
    m1 = mn_ref[0]                       # (F1, F1) group-mean (groups of C1)
    m2 = mn_ref[1]                       # (F2, F2) group-mean (groups of C2)

    # resize + im2col + conv1, folded into one bf16 matmul (f32 accumulate)
    h = jnp.dot(x.astype(jnp.bfloat16), b1_ref[...],
                preferred_element_type=jnp.float32) + b1t          # (B, F1)
    h = _gelu(_group_ln(h, m1, g1t, be1t))

    # conv2 (k2,s2) as a block-structured matmul
    h = jnp.dot(h, a2_ref[...], preferred_element_type=jnp.float32) + b2t
    h = _gelu(_group_ln(h, m2, g2t, be2t))                          # (B, F2)

    # 1x1 conv as block-diagonal matmul; lane-dense (B, 128) output
    out_ref[...] = jnp.dot(h, a3_ref[...],
                           preferred_element_type=jnp.float32) + b3t


# -------------------------------- wrapper ------------------------------------
def img_prompt_encoder(x, kp):
    b = x.shape[0]
    x2d = x.reshape(b, -1)               # (B, 3*H*W), free XLA reshape
    vmem = pl.BlockSpec(memory_space=pltpu.MemorySpace.VMEM)
    out = pl.pallas_call(
        _encoder_kernel,
        out_shape=jax.ShapeDtypeStruct((b, F3), jnp.float32),
        in_specs=[vmem] * 6,
        out_specs=vmem,
    )(x2d, kp["B1"], kp["A2"], kp["A3"], kp["MN"], kp["VEC"])
    return out.reshape(b, NTOK, HID)     # matches flatten(2).transpose(1,2)


# --------------------------- host-side folding -------------------------------
def _bilinear_matrix(out_size, in_size):
    """1-D bilinear interpolation matrix (align_corners=False, no antialias)."""
    m = np.zeros((out_size, in_size), np.float32)
    scale = in_size / out_size
    for i in range(out_size):
        s = (i + 0.5) * scale - 0.5
        i0 = int(np.floor(s))
        f = s - i0
        lo = min(max(i0, 0), in_size - 1)
        hi = min(max(i0 + 1, 0), in_size - 1)
        m[i, lo] += 1.0 - f
        m[i, hi] += f
    return m


def pack_params(raw, rh, rw):
    w1 = np.asarray(raw["w1"])           # (C1, C_IN, 2, 2)
    w2 = np.asarray(raw["w2"])           # (C2, C1, 2, 2)
    w3 = np.asarray(raw["w3"])[:, :, 0, 0]   # (HID, C2)

    # B1: resize + im2col + conv1 folded  ->  (F0, F1)
    kh = rh.reshape(H1, 2, IMG_H)        # kh[i1, di, H] = rh[2*i1 + di, H]
    kw = rw.reshape(H1, 2, IMG_W)        # kw[j1, dj, W] = rw[2*j1 + dj, W]
    b1m = np.einsum("ocde,idh,jew->chwijo", w1, kh, kw)   # (C_IN,H,W,i1,j1,oc)
    b1m = b1m.reshape(F0, F1)

    # A2: conv2 (k2,s2, C1->C2) on the flat (p1*C1 + c) layout  ->  (F1, F2)
    a2 = np.zeros((F1, F2), np.float32)
    for i2 in range(H2):
        for j2 in range(H2):
            p2 = i2 * H2 + j2
            for di in range(2):
                for dj in range(2):
                    p1 = (2 * i2 + di) * H1 + (2 * j2 + dj)
                    for c in range(C1):
                        a2[p1 * C1 + c, p2 * C2:(p2 + 1) * C2] = w2[:, c, di, dj]

    # A3: 1x1 conv (C2 -> HID), block-diagonal per token  ->  (F2, F3)
    a3 = np.zeros((F2, F3), np.float32)
    for p2 in range(NTOK):
        a3[p2 * C2:(p2 + 1) * C2, p2 * HID:(p2 + 1) * HID] = w3.T

    # group-mean matrices for the two channel LayerNorms
    m1 = np.kron(np.eye(H1 * H1, dtype=np.float32),
                 np.full((C1, C1), 1.0 / C1, np.float32))
    m2 = np.kron(np.eye(H2 * H2, dtype=np.float32),
                 np.full((C2, C2), 1.0 / C2, np.float32))
    mn = np.stack([m1, m2])              # (2, 64, 64)

    # packed bias / LayerNorm vectors -> single (8, 128) slab (one DMA)
    vec = np.zeros((8, 128), np.float32)
    vec[0, :F1] = np.tile(np.asarray(raw["b1"]), H1 * H1)
    vec[1, :F1] = np.tile(np.asarray(raw["g1"]), H1 * H1)
    vec[2, :F1] = np.tile(np.asarray(raw["be1"]), H1 * H1)
    vec[3, :F2] = np.tile(np.asarray(raw["b2"]), H2 * H2)
    vec[4, :F2] = np.tile(np.asarray(raw["g2"]), H2 * H2)
    vec[5, :F2] = np.tile(np.asarray(raw["be2"]), H2 * H2)
    vec[6, :F3] = np.tile(np.asarray(raw["b3"]), NTOK)

    return dict(
        B1=jnp.asarray(b1m, jnp.bfloat16),   # dominant weight stream -> bf16
        A2=jnp.asarray(a2, jnp.float32),
        A3=jnp.asarray(a3, jnp.float32),
        MN=jnp.asarray(mn, jnp.float32),
        VEC=jnp.asarray(vec, jnp.float32),
    )


# ---------------------------- raw parameter init -----------------------------
def init_raw_params(key):
    ks = jax.random.split(key, 10)
    n = lambda k, s, std: jax.random.normal(k, s, jnp.float32) * std
    p = {}
    p["w1"] = n(ks[0], (C1, C_IN, 2, 2), 1.0 / math.sqrt(C_IN * 4))
    p["b1"] = n(ks[1], (C1,), 0.02)
    p["g1"] = 1.0 + 0.1 * jax.random.normal(ks[2], (C1,), jnp.float32)
    p["be1"] = n(ks[3], (C1,), 0.05)
    p["w2"] = n(ks[4], (C2, C1, 2, 2), 1.0 / math.sqrt(C1 * 4))
    p["b2"] = n(ks[5], (C2,), 0.02)
    p["g2"] = 1.0 + 0.1 * jax.random.normal(ks[6], (C2,), jnp.float32)
    p["be2"] = n(ks[7], (C2,), 0.05)
    p["w3"] = n(ks[8], (HID, C2, 1, 1), 1.0 / math.sqrt(C2))
    p["b3"] = n(ks[9], (HID,), 0.02)
    return p


# ----------------------------- pure-JAX reference ----------------------------
def reference(x, raw, rh, rw):
    rh_j, rw_j = jnp.asarray(rh), jnp.asarray(rw)
    r = jnp.einsum("hH,bcHW,wW->bchw", rh_j, x, rw_j)        # bilinear resize

    def conv(z, w, b, s):
        y = jax.lax.conv_general_dilated(
            z, w, (s, s), "VALID",
            dimension_numbers=("NCHW", "OIHW", "NCHW"))
        return y + b[None, :, None, None]

    def ln2d(z, g, be):
        u = jnp.mean(z, axis=1, keepdims=True)
        v = jnp.mean(jnp.square(z - u), axis=1, keepdims=True)
        return (z - u) * jax.lax.rsqrt(v + EPS) * g[None, :, None, None] \
            + be[None, :, None, None]

    y = conv(r, raw["w1"], raw["b1"], 2)
    y = _gelu(ln2d(y, raw["g1"], raw["be1"]))
    y = conv(y, raw["w2"], raw["b2"], 2)
    y = _gelu(ln2d(y, raw["g2"], raw["be2"]))
    y = conv(y, raw["w3"], raw["b3"], 1)
    b, c, hh, ww = y.shape
    return y.reshape(b, c, hh * ww).transpose(0, 2, 1)       # flatten(2).T(1,2)


# ---------------------------------- main --------------------------------------
if __name__ == "__main__":
    key = jax.random.PRNGKey(0)
    k_x, k_p = jax.random.split(key)
    raw = init_raw_params(k_p)
    x = jax.random.normal(k_x, (B, C_IN, IMG_H, IMG_W), jnp.float32)

    rh = _bilinear_matrix(RS, IMG_H)
    rw = _bilinear_matrix(RS, IMG_W)     # target = (img_h/scale, img_h/scale)
    kp = pack_params(raw, rh, rw)

    out = jax.block_until_ready(img_prompt_encoder(x, kp))
    assert out.shape == (B, NTOK, HID), out.shape

    ref = jax.block_until_ready(reference(x, raw, rh, rw))
    np.testing.assert_allclose(np.asarray(out), np.asarray(ref),
                               atol=2e-2, rtol=2e-2)
    print("KERNEL_OK")
</pallas_src>

<mosaic_0001>
module attributes {stable_mosaic.version = 11 : i64} {
  func.func @_encoder_kernel(%arg0: memref<2x3072xf32, #tpu.memory_space<vmem>>, %arg1: memref<3072x64xbf16, #tpu.memory_space<vmem>>, %arg2: memref<64x64xf32, #tpu.memory_space<vmem>>, %arg3: memref<64x128xf32, #tpu.memory_space<vmem>>, %arg4: memref<2x64x64xf32, #tpu.memory_space<vmem>>, %arg5: memref<8x128xf32, #tpu.memory_space<vmem>>, %arg6: memref<2x128xf32, #tpu.memory_space<vmem>>) attributes {dimension_semantics = [], scalar_prefetch = 0 : i64, scratch_operands = 0 : i64, tpu.core_type = #tpu.core_type<tc>} {
    %c0 = arith.constant 0 : index
    %c0_0 = arith.constant 0 : index
    %0 = vector.load %arg0[%c0, %c0_0] : memref<2x3072xf32, #tpu.memory_space<vmem>>, vector<2x3072xf32>
    %c0_1 = arith.constant 0 : index
    %c0_2 = arith.constant 0 : index
    %1 = vector.load %arg5[%c0_1, %c0_2] : memref<8x128xf32, #tpu.memory_space<vmem>>, vector<8x128xf32>
    %2 = vector.extract_strided_slice %1 {offsets = [0, 0], sizes = [1, 64], strides = [1, 1]} : vector<8x128xf32> to vector<1x64xf32>
    %3 = vector.extract_strided_slice %1 {offsets = [1, 0], sizes = [1, 64], strides = [1, 1]} : vector<8x128xf32> to vector<1x64xf32>
    %4 = vector.extract_strided_slice %1 {offsets = [2, 0], sizes = [1, 64], strides = [1, 1]} : vector<8x128xf32> to vector<1x64xf32>
    %5 = vector.extract_strided_slice %1 {offsets = [3, 0], sizes = [1, 64], strides = [1, 1]} : vector<8x128xf32> to vector<1x64xf32>
    %6 = vector.extract_strided_slice %1 {offsets = [4, 0], sizes = [1, 64], strides = [1, 1]} : vector<8x128xf32> to vector<1x64xf32>
    %7 = vector.extract_strided_slice %1 {offsets = [5, 0], sizes = [1, 64], strides = [1, 1]} : vector<8x128xf32> to vector<1x64xf32>
    %8 = vector.extract_strided_slice %1 {offsets = [6, 0], sizes = [1, 128], strides = [1, 1]} : vector<8x128xf32> to vector<1x128xf32>
    %c0_3 = arith.constant 0 : index
    %c0_4 = arith.constant 0 : index
    %c0_5 = arith.constant 0 : index
    %9 = vector.load %arg4[%c0_3, %c0_4, %c0_5] : memref<2x64x64xf32, #tpu.memory_space<vmem>>, vector<1x64x64xf32>
    %10 = vector.shape_cast %9 : vector<1x64x64xf32> to vector<64x64xf32>
    %c1 = arith.constant 1 : index
    %c0_6 = arith.constant 0 : index
    %c0_7 = arith.constant 0 : index
    %11 = vector.load %arg4[%c1, %c0_6, %c0_7] : memref<2x64x64xf32, #tpu.memory_space<vmem>>, vector<1x64x64xf32>
    %12 = vector.shape_cast %11 : vector<1x64x64xf32> to vector<64x64xf32>
    %13 = arith.truncf %0 : vector<2x3072xf32> to vector<2x3072xbf16>
    %c0_8 = arith.constant 0 : index
    %c0_9 = arith.constant 0 : index
    %14 = vector.load %arg1[%c0_8, %c0_9] : memref<3072x64xbf16, #tpu.memory_space<vmem>>, vector<3072x64xbf16>
    %cst = arith.constant dense<0.000000e+00> : vector<2x64xf32>
    %15 = tpu.matmul %13, %14, %cst {dimension_numbers = #tpu.dot_dimension_numbers<[1], [0], [0], [1], [0, 0, 1, 1], [], []>} : vector<2x3072xbf16>, vector<3072x64xbf16>, vector<2x64xf32> -> vector<2x64xf32>
    %16 = vector.broadcast %2 : vector<1x64xf32> to vector<2x64xf32>
    %17 = arith.addf %15, %16 : vector<2x64xf32>
    %cst_10 = arith.constant dense<0.000000e+00> : vector<2x64xf32>
    %18 = tpu.matmul %17, %10, %cst_10 {dimension_numbers = #tpu.dot_dimension_numbers<[1], [0], [0], [1], [0, 0, 1, 1], [], []>} : vector<2x64xf32>, vector<64x64xf32>, vector<2x64xf32> -> vector<2x64xf32>
    %19 = arith.mulf %17, %17 : vector<2x64xf32>
    %cst_11 = arith.constant dense<0.000000e+00> : vector<2x64xf32>
    %20 = tpu.matmul %19, %10, %cst_11 {dimension_numbers = #tpu.dot_dimension_numbers<[1], [0], [0], [1], [0, 0, 1, 1], [], []>} : vector<2x64xf32>, vector<64x64xf32>, vector<2x64xf32> -> vector<2x64xf32>
    %21 = arith.mulf %18, %18 : vector<2x64xf32>
    %22 = arith.subf %20, %21 : vector<2x64xf32>
    %23 = arith.subf %17, %18 : vector<2x64xf32>
    %cst_12 = arith.constant 9.99999997E-7 : f32
    %24 = vector.broadcast %cst_12 : f32 to vector<2x64xf32>
    %25 = arith.addf %22, %24 : vector<2x64xf32>
    %26 = math.rsqrt %25 : vector<2x64xf32>
    %27 = arith.mulf %23, %26 : vector<2x64xf32>
    %28 = vector.broadcast %3 : vector<1x64xf32> to vector<2x64xf32>
    %29 = arith.mulf %27, %28 : vector<2x64xf32>
    %30 = vector.broadcast %4 : vector<1x64xf32> to vector<2x64xf32>
    %31 = arith.addf %29, %30 : vector<2x64xf32>
    %cst_13 = arith.constant 5.000000e-01 : f32
    %32 = vector.broadcast %cst_13 : f32 to vector<2x64xf32>
    %33 = arith.mulf %32, %31 : vector<2x64xf32>
    %cst_14 = arith.constant 4.471500e-02 : f32
    %34 = vector.broadcast %cst_14 : f32 to vector<2x64xf32>
    %35 = arith.mulf %34, %31 : vector<2x64xf32>
    %36 = arith.mulf %35, %31 : vector<2x64xf32>
    %37 = arith.mulf %36, %31 : vector<2x64xf32>
    %38 = arith.addf %31, %37 : vector<2x64xf32>
    %cst_15 = arith.constant 0.797884583 : f32
    %39 = vector.broadcast %cst_15 : f32 to vector<2x64xf32>
    %40 = arith.mulf %39, %38 : vector<2x64xf32>
    %41 = math.tanh %40 : vector<2x64xf32>
    %cst_16 = arith.constant 1.000000e+00 : f32
    %42 = vector.broadcast %cst_16 : f32 to vector<2x64xf32>
    %43 = arith.addf %42, %41 : vector<2x64xf32>
    %44 = arith.mulf %33, %43 : vector<2x64xf32>
    %c0_17 = arith.constant 0 : index
    %c0_18 = arith.constant 0 : index
    %45 = vector.load %arg2[%c0_17, %c0_18] : memref<64x64xf32, #tpu.memory_space<vmem>>, vector<64x64xf32>
    %cst_19 = arith.constant dense<0.000000e+00> : vector<2x64xf32>
    %46 = tpu.matmul %44, %45, %cst_19 {dimension_numbers = #tpu.dot_dimension_numbers<[1], [0], [0], [1], [0, 0, 1, 1], [], []>} : vector<2x64xf32>, vector<64x64xf32>, vector<2x64xf32> -> vector<2x64xf32>
    %47 = vector.broadcast %5 : vector<1x64xf32> to vector<2x64xf32>
    %48 = arith.addf %46, %47 : vector<2x64xf32>
    %cst_20 = arith.constant dense<0.000000e+00> : vector<2x64xf32>
    %49 = tpu.matmul %48, %12, %cst_20 {dimension_numbers = #tpu.dot_dimension_numbers<[1], [0], [0], [1], [0, 0, 1, 1], [], []>} : vector<2x64xf32>, vector<64x64xf32>, vector<2x64xf32> -> vector<2x64xf32>
    %50 = arith.mulf %48, %48 : vector<2x64xf32>
    %cst_21 = arith.constant dense<0.000000e+00> : vector<2x64xf32>
    %51 = tpu.matmul %50, %12, %cst_21 {dimension_numbers = #tpu.dot_dimension_numbers<[1], [0], [0], [1], [0, 0, 1, 1], [], []>} : vector<2x64xf32>, vector<64x64xf32>, vector<2x64xf32> -> vector<2x64xf32>
    %52 = arith.mulf %49, %49 : vector<2x64xf32>
    %53 = arith.subf %51, %52 : vector<2x64xf32>
    %54 = arith.subf %48, %49 : vector<2x64xf32>
    %cst_22 = arith.constant 9.99999997E-7 : f32
    %55 = vector.broadcast %cst_22 : f32 to vector<2x64xf32>
    %56 = arith.addf %53, %55 : vector<2x64xf32>
    %57 = math.rsqrt %56 : vector<2x64xf32>
    %58 = arith.mulf %54, %57 : vector<2x64xf32>
    %59 = vector.broadcast %6 : vector<1x64xf32> to vector<2x64xf32>
    %60 = arith.mulf %58, %59 : vector<2x64xf32>
    %61 = vector.broadcast %7 : vector<1x64xf32> to vector<2x64xf32>
    %62 = arith.addf %60, %61 : vector<2x64xf32>
    %cst_23 = arith.constant 5.000000e-01 : f32
    %63 = vector.broadcast %cst_23 : f32 to vector<2x64xf32>
    %64 = arith.mulf %63, %62 : vector<2x64xf32>
    %cst_24 = arith.constant 4.471500e-02 : f32
    %65 = vector.broadcast %cst_24 : f32 to vector<2x64xf32>
    %66 = arith.mulf %65, %62 : vector<2x64xf32>
    %67 = arith.mulf %66, %62 : vector<2x64xf32>
    %68 = arith.mulf %67, %62 : vector<2x64xf32>
    %69 = arith.addf %62, %68 : vector<2x64xf32>
    %cst_25 = arith.constant 0.797884583 : f32
    %70 = vector.broadcast %cst_25 : f32 to vector<2x64xf32>
    %71 = arith.mulf %70, %69 : vector<2x64xf32>
    %72 = math.tanh %71 : vector<2x64xf32>
    %cst_26 = arith.constant 1.000000e+00 : f32
    %73 = vector.broadcast %cst_26 : f32 to vector<2x64xf32>
    %74 = arith.addf %73, %72 : vector<2x64xf32>
    %75 = arith.mulf %64, %74 : vector<2x64xf32>
    %c0_27 = arith.constant 0 : index
    %c0_28 = arith.constant 0 : index
    %76 = vector.load %arg3[%c0_27, %c0_28] : memref<64x128xf32, #tpu.memory_space<vmem>>, vector<64x128xf32>
    %cst_29 = arith.constant dense<0.000000e+00> : vector<2x128xf32>
    %77 = tpu.matmul %75, %76, %cst_29 {dimension_numbers = #tpu.dot_dimension_numbers<[1], [0], [0], [1], [0, 0, 1, 1], [], []>} : vector<2x64xf32>, vector<64x128xf32>, vector<2x128xf32> -> vector<2x128xf32>
    %78 = vector.broadcast %8 : vector<1x128xf32> to vector<2x128xf32>
    %79 = arith.addf %77, %78 : vector<2x128xf32>
    %c0_30 = arith.constant 0 : index
    %c0_31 = arith.constant 0 : index
    %80 = vector.load %arg6[%c0_30, %c0_31] : memref<2x128xf32, #tpu.memory_space<vmem>>, vector<2x128xf32>
    tpu.vector_store %arg6[%c0_30, %c0_31], %79 {strides = array<i32>} : memref<2x128xf32, #tpu.memory_space<vmem>>, vector<2x128xf32>,
    return
  }
}

</mosaic_0001>

<llo_original>
// kernel: tpu_custom_call.1
$region0: #{tpu_custom_call.1}
  #allocation0 [shape = 'u32[]', space=smem, size = 0x4, offset = 0x4, fixed_abs, tag = 'smem constant byte address 0x4 - core index']
  #allocation1 [shape = 'u32[144,128]{1,0:T(1,128)}', space=vmem, size = 0x12000, scoped, tag = 'internal scratch']
  %s0 = inlined_call_operand.vmem [shape: f32[2,3072], index: 0, kind: input, shape index: {}]
  %s1 = inlined_call_operand.vmem [shape: bf16[3072,64], index: 1, kind: input, shape index: {}]
  %s2 = inlined_call_operand.vmem [shape: f32[64,64], index: 2, kind: input, shape index: {}]
  %s3 = inlined_call_operand.vmem [shape: f32[64,128], index: 3, kind: input, shape index: {}]
  %s4 = inlined_call_operand.vmem [shape: f32[2,64,64], index: 4, kind: input, shape index: {}]
  %s5 = inlined_call_operand.vmem [shape: f32[8,128], index: 5, kind: input, shape index: {}]
  %s6 = inlined_call_operand.hbm [shape: f32[2,128], index: 6, kind: output, shape index: {}]
  %s7 = sld [smem:[#allocation0]]
  $region34: #{tpu_custom_call.1} parent=0
    _
  %s9 = ssub.s32 1, %s7
  %s10 = scalar_select 0, %s9, %s7
  $region1: #{tpu_custom_call.1} parent=0
    #allocation2 [shape = 'u8[1024]{0}', space=vmem, size = 0x400, scoped, tag = 'output window, operand 0, single buffered']
    #allocation3 [shape = 's32[1]{0}', space=sflag, size = 0x4, scoped, tag = 'scoped memory for tpu_custom_call.1']
    %11 = vsyncpa [#allocation3], 0
    // Predicated region
    $region2: #{tpu_custom_call.1} parent=1 // pred_check
      _
    $region3: #{tpu_custom_call.1} parent=1 // pred_check_branch
      %13 = sbr.rel (0) target = $region5
    $region4: #{tpu_custom_call.1} parent=1 // pred_region
      _
    $region5: #{tpu_custom_call.1} parent=1 // pred_fallthru
      _
    // Predicated region
    $region6: #{tpu_custom_call.1} parent=1 // pred_check
      _
    $region7: #{tpu_custom_call.1} parent=1 // pred_check_branch
      %15 = sbr.rel (0) target = $region9
    $region8: #{tpu_custom_call.1} parent=1 // pred_region
      _
    $region9: #{tpu_custom_call.1} parent=1 // pred_fallthru
      _
    // Predicated region
    $region10: #{tpu_custom_call.1} parent=1 // pred_check
      _
    $region11: #{tpu_custom_call.1} parent=1 // pred_check_branch
      %17 = sbr.rel (0) target = $region13
    $region12: #{tpu_custom_call.1} parent=1 // pred_region
      _
    $region13: #{tpu_custom_call.1} parent=1 // pred_fallthru
      _
    // Predicated region
    $region14: #{tpu_custom_call.1} parent=1 // pred_check
      _
    $region15: #{tpu_custom_call.1} parent=1 // pred_check_branch
      %19 = sbr.rel (0) target = $region17
    $region16: #{tpu_custom_call.1} parent=1 // pred_region
      _
    $region17: #{tpu_custom_call.1} parent=1 // pred_fallthru
      _
    // Predicated region
    $region18: #{tpu_custom_call.1} parent=1 // pred_check
      _
    $region19: #{tpu_custom_call.1} parent=1 // pred_check_branch
      %21 = sbr.rel (0) target = $region21
    $region20: #{tpu_custom_call.1} parent=1 // pred_region
      _
    $region21: #{tpu_custom_call.1} parent=1 // pred_fallthru
      _
    // Predicated region
    $region22: #{tpu_custom_call.1} parent=1 // pred_check
      _
    $region23: #{tpu_custom_call.1} parent=1 // pred_check_branch
      %23 = sbr.rel (0) target = $region25
    $region24: #{tpu_custom_call.1} parent=1 // pred_region
      _
    $region25: #{tpu_custom_call.1} parent=1 // pred_fallthru
      _
    %v25 = vld [vmem:[%s0] sm:$0xff]
    %v26 = vld [vmem:[%s0 + $0x8] sm:$0xff]
    %v27 = vld [vmem:[%s0 + $0x10] sm:$0xff]
    %v28 = vld [vmem:[%s0 + $0x18] sm:$0xff]
    %v29 = vld [vmem:[%s0 + $0x20] sm:$0xff]
    %v30 = vld [vmem:[%s0 + $0x28] sm:$0xff]
    %v31 = vld [vmem:[%s5] sm:$0xff]
    %v32 = vld [vmem:[%s4] sm:$0xff]
    %v33 = vld [vmem:[%s4 + $0x8] sm:$0xff]
    %v34 = vld [vmem:[%s4 + $0x10] sm:$0xff]
    %v35 = vld [vmem:[%s4 + $0x18] sm:$0xff]
    %v36 = vld [vmem:[%s4 + $0x20] sm:$0xff]
    %v37 = vld [vmem:[%s4 + $0x28] sm:$0xff]
    %v38 = vld [vmem:[%s4 + $0x30] sm:$0xff]
    %v39 = vld [vmem:[%s4 + $0x38] sm:$0xff]
    %s40 = scalar_lea.vmem %s4, 64
    %v41 = vld [vmem:[%s40] sm:$0xff]
    %v42 = vld [vmem:[%s40 + $0x8] sm:$0xff]
    %v43 = vld [vmem:[%s40 + $0x10] sm:$0xff]
    %v44 = vld [vmem:[%s40 + $0x18] sm:$0xff]
    %v45 = vld [vmem:[%s40 + $0x20] sm:$0xff]
    %v46 = vld [vmem:[%s40 + $0x28] sm:$0xff]
    %v47 = vld [vmem:[%s40 + $0x30] sm:$0xff]
    %v48 = vld [vmem:[%s40 + $0x38] sm:$0xff]
    %v55 = vcombine.high %v25, %v25
    %v57 = vunpack.c.l.s4 1983009808
    %v58 = vunpack.c.0.s8 %v57
    %v59 = vlaneseq
    %v60 = vshrl.u32 %v59, 7
    %v61 = vsub.s32 %v58, %v60
    %v62 = vrot.slane %v25, %v61
    %v64 = vunpack.c.l.s4 1983009808
    %v65 = vunpack.c.0.s8 %v64
    %v66 = vlaneseq
    %v67 = vshrl.u32 %v66, 7
    %v68 = vsub.s32 %v65, %v67
    %v69 = vrot.slane %v55, %v68
    %v70 = vcombine.high %v62, %v62
    %v71 = vcombine.high %v69, %v69
    %v72 = vcombine.high %v26, %v26
    %v74 = vunpack.c.l.s4 1983009808
    %v75 = vunpack.c.0.s8 %v74
    %v76 = vlaneseq
    %v77 = vshrl.u32 %v76, 7
    %v78 = vsub.s32 %v75, %v77
    %v79 = vrot.slane %v26, %v78
    %v81 = vunpack.c.l.s4 1983009808
    %v82 = vunpack.c.0.s8 %v81
    %v83 = vlaneseq
    %v84 = vshrl.u32 %v83, 7
    %v85 = vsub.s32 %v82, %v84
    %v86 = vrot.slane %v72, %v85
    %v87 = vcombine.high %v79, %v79
    %v88 = vcombine.high %v86, %v86
    %v89 = vcombine.high %v27, %v27
    %v91 = vunpack.c.l.s4 1983009808
    %v92 = vunpack.c.0.s8 %v91
    %v93 = vlaneseq
    %v94 = vshrl.u32 %v93, 7
    %v95 = vsub.s32 %v92, %v94
    %v96 = vrot.slane %v27, %v95
    %v98 = vunpack.c.l.s4 1983009808
    %v99 = vunpack.c.0.s8 %v98
    %v100 = vlaneseq
    %v101 = vshrl.u32 %v100, 7
    %v102 = vsub.s32 %v99, %v101
    %v103 = vrot.slane %v89, %v102
    %v104 = vcombine.high %v96, %v96
    %v105 = vcombine.high %v103, %v103
    %v106 = vcombine.high %v28, %v28
    %v108 = vunpack.c.l.s4 1983009808
    %v109 = vunpack.c.0.s8 %v108
    %v110 = vlaneseq
    %v111 = vshrl.u32 %v110, 7
    %v112 = vsub.s32 %v109, %v111
    %v113 = vrot.slane %v28, %v112
    %v115 = vunpack.c.l.s4 1983009808
    %v116 = vunpack.c.0.s8 %v115
    %v117 = vlaneseq
    %v118 = vshrl.u32 %v117, 7
    %v119 = vsub.s32 %v116, %v118
    %v120 = vrot.slane %v106, %v119
    %v121 = vcombine.high %v113, %v113
    %v122 = vcombine.high %v120, %v120
    %v123 = vcombine.high %v29, %v29
    %v125 = vunpack.c.l.s4 1983009808
    %v126 = vunpack.c.0.s8 %v125
    %v127 = vlaneseq
    %v128 = vshrl.u32 %v127, 7
    %v129 = vsub.s32 %v126, %v128
    %v130 = vrot.slane %v29, %v129
    %v132 = vunpack.c.l.s4 1983009808
    %v133 = vunpack.c.0.s8 %v132
    %v134 = vlaneseq
    %v135 = vshrl.u32 %v134, 7
    %v136 = vsub.s32 %v133, %v135
    %v137 = vrot.slane %v123, %v136
    %v138 = vcombine.high %v130, %v130
    %v139 = vcombine.high %v137, %v137
    %v140 = vcombine.high %v30, %v30
    %v142 = vunpack.c.l.s4 1983009808
    %v143 = vunpack.c.0.s8 %v142
    %v144 = vlaneseq
    %v145 = vshrl.u32 %v144, 7
    %v146 = vsub.s32 %v143, %v145
    %v147 = vrot.slane %v30, %v146
    %v149 = vunpack.c.l.s4 1983009808
    %v150 = vunpack.c.0.s8 %v149
    %v151 = vlaneseq
    %v152 = vshrl.u32 %v151, 7
    %v153 = vsub.s32 %v150, %v152
    %v154 = vrot.slane %v140, %v153
    %v155 = vcombine.high %v147, %v147
    %v156 = vcombine.high %v154, %v154
    %v181 = vpack.c.bf16 %v62, %v62
    %v182 = vpack.c.bf16 %v70, %v70
    %v183 = vpack.c.bf16 %v69, %v69
    %v184 = vpack.c.bf16 %v71, %v71
    %v185 = vpack.c.bf16 %v79, %v79
    %v186 = vpack.c.bf16 %v87, %v87
    %v187 = vpack.c.bf16 %v86, %v86
    %v188 = vpack.c.bf16 %v88, %v88
    %v189 = vpack.c.bf16 %v96, %v96
    %v190 = vpack.c.bf16 %v104, %v104
    %v191 = vpack.c.bf16 %v103, %v103
    %v192 = vpack.c.bf16 %v105, %v105
    %v193 = vpack.c.bf16 %v113, %v113
    %v194 = vpack.c.bf16 %v121, %v121
    %v195 = vpack.c.bf16 %v120, %v120
    %v196 = vpack.c.bf16 %v122, %v122
    %v197 = vpack.c.bf16 %v130, %v130
    %v198 = vpack.c.bf16 %v138, %v138
    %v199 = vpack.c.bf16 %v137, %v137
    %v200 = vpack.c.bf16 %v139, %v139
    %v201 = vpack.c.bf16 %v147, %v147
    %v202 = vpack.c.bf16 %v155, %v155
    %v203 = vpack.c.bf16 %v154, %v154
    %v204 = vpack.c.bf16 %v156, %v156
    %v205 = vld [vmem:[%s1] sm:$0xf]
    %v206 = vld [vmem:[%s1 + $0x4] sm:$0xf]
    %v207 = vld [vmem:[%s1 + $0x8] sm:$0xf]
    %v208 = vld [vmem:[%s1 + $0xc] sm:$0xf]
    %v209 = vld [vmem:[%s1 + $0x10] sm:$0xf]
    %v210 = vld [vmem:[%s1 + $0x14] sm:$0xf]
    %v211 = vld [vmem:[%s1 + $0x18] sm:$0xf]
    %v212 = vld [vmem:[%s1 + $0x1c] sm:$0xf]
    %v213 = vld [vmem:[%s1 + $0x20] sm:$0xf]
    %v214 = vld [vmem:[%s1 + $0x24] sm:$0xf]
    %v215 = vld [vmem:[%s1 + $0x28] sm:$0xf]
    %v216 = vld [vmem:[%s1 + $0x2c] sm:$0xf]
    %v217 = vld [vmem:[%s1 + $0x30] sm:$0xf]
    %v218 = vld [vmem:[%s1 + $0x34] sm:$0xf]
    %v219 = vld [vmem:[%s1 + $0x38] sm:$0xf]
    %v220 = vld [vmem:[%s1 + $0x3c] sm:$0xf]
    %v221 = vld [vmem:[%s1 + $0x40] sm:$0xf]
    %v222 = vld [vmem:[%s1 + $0x44] sm:$0xf]
    %v223 = vld [vmem:[%s1 + $0x48] sm:$0xf]
    %v224 = vld [vmem:[%s1 + $0x4c] sm:$0xf]
    %v225 = vld [vmem:[%s1 + $0x50] sm:$0xf]
    %v226 = vld [vmem:[%s1 + $0x54] sm:$0xf]
    %v227 = vld [vmem:[%s1 + $0x58] sm:$0xf]
    %v228 = vld [vmem:[%s1 + $0x5c] sm:$0xf]
    %v229 = vld [vmem:[%s1 + $0x60] sm:$0xf]
    %v230 = vld [vmem:[%s1 + $0x64] sm:$0xf]
    %v231 = vld [vmem:[%s1 + $0x68] sm:$0xf]
    %v232 = vld [vmem:[%s1 + $0x6c] sm:$0xf]
    %v233 = vld [vmem:[%s1 + $0x70] sm:$0xf]
    %v234 = vld [vmem:[%s1 + $0x74] sm:$0xf]
    %v235 = vld [vmem:[%s1 + $0x78] sm:$0xf]
    %v236 = vld [vmem:[%s1 + $0x7c] sm:$0xf]
    %v237 = vld [vmem:[%s1 + $0x80] sm:$0xf]
    %v238 = vld [vmem:[%s1 + $0x84] sm:$0xf]
    %v239 = vld [vmem:[%s1 + $0x88] sm:$0xf]
    %v240 = vld [vmem:[%s1 + $0x8c] sm:$0xf]
    %v241 = vld [vmem:[%s1 + $0x90] sm:$0xf]
    %v242 = vld [vmem:[%s1 + $0x94] sm:$0xf]
    %v243 = vld [vmem:[%s1 + $0x98] sm:$0xf]
    %v244 = vld [vmem:[%s1 + $0x9c] sm:$0xf]
    %v245 = vld [vmem:[%s1 + $0xa0] sm:$0xf]
    %v246 = vld [vmem:[%s1 + $0xa4] sm:$0xf]
    %v247 = vld [vmem:[%s1 + $0xa8] sm:$0xf]
    %v248 = vld [vmem:[%s1 + $0xac] sm:$0xf]
    %v249 = vld [vmem:[%s1 + $0xb0] sm:$0xf]
    %v250 = vld [vmem:[%s1 + $0xb4] sm:$0xf]
    %v251 = vld [vmem:[%s1 + $0xb8] sm:$0xf]
    %v252 = vld [vmem:[%s1 + $0xbc] sm:$0xf]
    %v253 = vld [vmem:[%s1 + $0xc0] sm:$0xf]
    %v254 = vld [vmem:[%s1 + $0xc4] sm:$0xf]
    %v255 = vld [vmem:[%s1 + $0xc8] sm:$0xf]
    %v256 = vld [vmem:[%s1 + $0xcc] sm:$0xf]
    %v257 = vld [vmem:[%s1 + $0xd0] sm:$0xf]
    %v258 = vld [vmem:[%s1 + $0xd4] sm:$0xf]
    %v259 = vld [vmem:[%s1 + $0xd8] sm:$0xf]
    %v260 = vld [vmem:[%s1 + $0xdc] sm:$0xf]
    %v261 = vld [vmem:[%s1 + $0xe0] sm:$0xf]
    %v262 = vld [vmem:[%s1 + $0xe4] sm:$0xf]
    %v263 = vld [vmem:[%s1 + $0xe8] sm:$0xf]
    %v264 = vld [vmem:[%s1 + $0xec] sm:$0xf]
    %v265 = vld [vmem:[%s1 + $0xf0] sm:$0xf]
    %v266 = vld [vmem:[%s1 + $0xf4] sm:$0xf]
    %v267 = vld [vmem:[%s1 + $0xf8] sm:$0xf]
    %v268 = vld [vmem:[%s1 + $0xfc] sm:$0xf]
    %v269 = vld [vmem:[%s1 + $0x100] sm:$0xf]
    %v270 = vld [vmem:[%s1 + $0x104] sm:$0xf]
    %v271 = vld [vmem:[%s1 + $0x108] sm:$0xf]
    %v272 = vld [vmem:[%s1 + $0x10c] sm:$0xf]
    %v273 = vld [vmem:[%s1 + $0x110] sm:$0xf]
    %v274 = vld [vmem:[%s1 + $0x114] sm:$0xf]
    %v275 = vld [vmem:[%s1 + $0x118] sm:$0xf]
    %v276 = vld [vmem:[%s1 + $0x11c] sm:$0xf]
    %v277 = vld [vmem:[%s1 + $0x120] sm:$0xf]
    %v278 = vld [vmem:[%s1 + $0x124] sm:$0xf]
    %v279 = vld [vmem:[%s1 + $0x128] sm:$0xf]
    %v280 = vld [vmem:[%s1 + $0x12c] sm:$0xf]
    %v281 = vld [vmem:[%s1 + $0x130] sm:$0xf]
    %v282 = vld [vmem:[%s1 + $0x134] sm:$0xf]
    %v283 = vld [vmem:[%s1 + $0x138] sm:$0xf]
    %v284 = vld [vmem:[%s1 + $0x13c] sm:$0xf]
    %v285 = vld [vmem:[%s1 + $0x140] sm:$0xf]
    %v286 = vld [vmem:[%s1 + $0x144] sm:$0xf]
    %v287 = vld [vmem:[%s1 + $0x148] sm:$0xf]
    %v288 = vld [vmem:[%s1 + $0x14c] sm:$0xf]
    %v289 = vld [vmem:[%s1 + $0x150] sm:$0xf]
    %v290 = vld [vmem:[%s1 + $0x154] sm:$0xf]
    %v291 = vld [vmem:[%s1 + $0x158] sm:$0xf]
    %v292 = vld [vmem:[%s1 + $0x15c] sm:$0xf]
    %v293 = vld [vmem:[%s1 + $0x160] sm:$0xf]
    %v294 = vld [vmem:[%s1 + $0x164] sm:$0xf]
    %v295 = vld [vmem:[%s1 + $0x168] sm:$0xf]
    %v296 = vld [vmem:[%s1 + $0x16c] sm:$0xf]
    %v297 = vld [vmem:[%s1 + $0x170] sm:$0xf]
    %v298 = vld [vmem:[%s1 + $0x174] sm:$0xf]
    %v299 = vld [vmem:[%s1 + $0x178] sm:$0xf]
    %v300 = vld [vmem:[%s1 + $0x17c] sm:$0xf]
    %v301 = vld [vmem:[%s1 + $0x180] sm:$0xf]
    %v302 = vld [vmem:[%s1 + $0x184] sm:$0xf]
    %v303 = vld [vmem:[%s1 + $0x188] sm:$0xf]
    %v304 = vld [vmem:[%s1 + $0x18c] sm:$0xf]
    %v305 = vld [vmem:[%s1 + $0x190] sm:$0xf]
    %v306 = vld [vmem:[%s1 + $0x194] sm:$0xf]
    %v307 = vld [vmem:[%s1 + $0x198] sm:$0xf]
    %v308 = vld [vmem:[%s1 + $0x19c] sm:$0xf]
    %v309 = vld [vmem:[%s1 + $0x1a0] sm:$0xf]
    %v310 = vld [vmem:[%s1 + $0x1a4] sm:$0xf]
    %v311 = vld [vmem:[%s1 + $0x1a8] sm:$0xf]
    %v312 = vld [vmem:[%s1 + $0x1ac] sm:$0xf]
    %v313 = vld [vmem:[%s1 + $0x1b0] sm:$0xf]
    %v314 = vld [vmem:[%s1 + $0x1b4] sm:$0xf]
    %v315 = vld [vmem:[%s1 + $0x1b8] sm:$0xf]
    %v316 = vld [vmem:[%s1 + $0x1bc] sm:$0xf]
    %v317 = vld [vmem:[%s1 + $0x1c0] sm:$0xf]
    %v318 = vld [vmem:[%s1 + $0x1c4] sm:$0xf]
    %v319 = vld [vmem:[%s1 + $0x1c8] sm:$0xf]
    %v320 = vld [vmem:[%s1 + $0x1cc] sm:$0xf]
    %v321 = vld [vmem:[%s1 + $0x1d0] sm:$0xf]
    %v322 = vld [vmem:[%s1 + $0x1d4] sm:$0xf]
    %v323 = vld [vmem:[%s1 + $0x1d8] sm:$0xf]
    %v324 = vld [vmem:[%s1 + $0x1dc] sm:$0xf]
    %v325 = vld [vmem:[%s1 + $0x1e0] sm:$0xf]
    %v326 = vld [vmem:[%s1 + $0x1e4] sm:$0xf]
    %v327 = vld [vmem:[%s1 + $0x1e8] sm:$0xf]
    %v328 = vld [vmem:[%s1 + $0x1ec] sm:$0xf]
    %v329 = vld [vmem:[%s1 + $0x1f0] sm:$0xf]
    %v330 = vld [vmem:[%s1 + $0x1f4] sm:$0xf]
    %v331 = vld [vmem:[%s1 + $0x1f8] sm:$0xf]
    %v332 = vld [vmem:[%s1 + $0x1fc] sm:$0xf]
    %v333 = vld [vmem:[%s1 + $0x200] sm:$0xf]
    %v334 = vld [vmem:[%s1 + $0x204] sm:$0xf]
    %v335 = vld [vmem:[%s1 + $0x208] sm:$0xf]
    %v336 = vld [vmem:[%s1 + $0x20c] sm:$0xf]
    %v337 = vld [vmem:[%s1 + $0x210] sm:$0xf]
    %v338 = vld [vmem:[%s1 + $0x214] sm:$0xf]
    %v339 = vld [vmem:[%s1 + $0x218] sm:$0xf]
    %v340 = vld [vmem:[%s1 + $0x21c] sm:$0xf]
    %v341 = vld [vmem:[%s1 + $0x220] sm:$0xf]
    %v342 = vld [vmem:[%s1 + $0x224] sm:$0xf]
    %v343 = vld [vmem:[%s1 + $0x228] sm:$0xf]
    %v344 = vld [vmem:[%s1 + $0x22c] sm:$0xf]
    %v345 = vld [vmem:[%s1 + $0x230] sm:$0xf]
    %v346 = vld [vmem:[%s1 + $0x234] sm:$0xf]
    %v347 = vld [vmem:[%s1 + $0x238] sm:$0xf]
    %v348 = vld [vmem:[%s1 + $0x23c] sm:$0xf]
    %v349 = vld [vmem:[%s1 + $0x240] sm:$0xf]
    %v350 = vld [vmem:[%s1 + $0x244] sm:$0xf]
    %v351 = vld [vmem:[%s1 + $0x248] sm:$0xf]
    %v352 = vld [vmem:[%s1 + $0x24c] sm:$0xf]
    %v353 = vld [vmem:[%s1 + $0x250] sm:$0xf]
    %v354 = vld [vmem:[%s1 + $0x254] sm:$0xf]
    %v355 = vld [vmem:[%s1 + $0x258] sm:$0xf]
    %v356 = vld [vmem:[%s1 + $0x25c] sm:$0xf]
    %v357 = vld [vmem:[%s1 + $0x260] sm:$0xf]
    %v358 = vld [vmem:[%s1 + $0x264] sm:$0xf]
    %v359 = vld [vmem:[%s1 + $0x268] sm:$0xf]
    %v360 = vld [vmem:[%s1 + $0x26c] sm:$0xf]
    %v361 = vld [vmem:[%s1 + $0x270] sm:$0xf]
    %v362 = vld [vmem:[%s1 + $0x274] sm:$0xf]
    %v363 = vld [vmem:[%s1 + $0x278] sm:$0xf]
    %v364 = vld [vmem:[%s1 + $0x27c] sm:$0xf]
    %v365 = vld [vmem:[%s1 + $0x280] sm:$0xf]
    %v366 = vld [vmem:[%s1 + $0x284] sm:$0xf]
    %v367 = vld [vmem:[%s1 + $0x288] sm:$0xf]
    %v368 = vld [vmem:[%s1 + $0x28c] sm:$0xf]
    %v369 = vld [vmem:[%s1 + $0x290] sm:$0xf]
    %v370 = vld [vmem:[%s1 + $0x294] sm:$0xf]
    %v371 = vld [vmem:[%s1 + $0x298] sm:$0xf]
    %v372 = vld [vmem:[%s1 + $0x29c] sm:$0xf]
    %v373 = vld [vmem:[%s1 + $0x2a0] sm:$0xf]
    %v374 = vld [vmem:[%s1 + $0x2a4] sm:$0xf]
    %v375 = vld [vmem:[%s1 + $0x2a8] sm:$0xf]
    %v376 = vld [vmem:[%s1 + $0x2ac] sm:$0xf]
    %v377 = vld [vmem:[%s1 + $0x2b0] sm:$0xf]
    %v378 = vld [vmem:[%s1 + $0x2b4] sm:$0xf]
    %v379 = vld [vmem:[%s1 + $0x2b8] sm:$0xf]
    %v380 = vld [vmem:[%s1 + $0x2bc] sm:$0xf]
    %v381 = vld [vmem:[%s1 + $0x2c0] sm:$0xf]
    %v382 = vld [vmem:[%s1 + $0x2c4] sm:$0xf]
    %v383 = vld [vmem:[%s1 + $0x2c8] sm:$0xf]
    %v384 = vld [vmem:[%s1 + $0x2cc] sm:$0xf]
    %v385 = vld [vmem:[%s1 + $0x2d0] sm:$0xf]
    %v386 = vld [vmem:[%s1 + $0x2d4] sm:$0xf]
    %v387 = vld [vmem:[%s1 + $0x2d8] sm:$0xf]
    %v388 = vld [vmem:[%s1 + $0x2dc] sm:$0xf]
    %v389 = vld [vmem:[%s1 + $0x2e0] sm:$0xf]
    %v390 = vld [vmem:[%s1 + $0x2e4] sm:$0xf]
    %v391 = vld [vmem:[%s1 + $0x2e8] sm:$0xf]
    %v392 = vld [vmem:[%s1 + $0x2ec] sm:$0xf]
    %v393 = vld [vmem:[%s1 + $0x2f0] sm:$0xf]
    %v394 = vld [vmem:[%s1 + $0x2f4] sm:$0xf]
    %v395 = vld [vmem:[%s1 + $0x2f8] sm:$0xf]
    %v396 = vld [vmem:[%s1 + $0x2fc] sm:$0xf]
    %v397 = vld [vmem:[%s1 + $0x300] sm:$0xf]
    %v398 = vld [vmem:[%s1 + $0x304] sm:$0xf]
    %v399 = vld [vmem:[%s1 + $0x308] sm:$0xf]
    %v400 = vld [vmem:[%s1 + $0x30c] sm:$0xf]
    %v401 = vld [vmem:[%s1 + $0x310] sm:$0xf]
    %v402 = vld [vmem:[%s1 + $0x314] sm:$0xf]
    %v403 = vld [vmem:[%s1 + $0x318] sm:$0xf]
    %v404 = vld [vmem:[%s1 + $0x31c] sm:$0xf]
    %v405 = vld [vmem:[%s1 + $0x320] sm:$0xf]
    %v406 = vld [vmem:[%s1 + $0x324] sm:$0xf]
    %v407 = vld [vmem:[%s1 + $0x328] sm:$0xf]
    %v408 = vld [vmem:[%s1 + $0x32c] sm:$0xf]
    %v409 = vld [vmem:[%s1 + $0x330] sm:$0xf]
    %v410 = vld [vmem:[%s1 + $0x334] sm:$0xf]
    %v411 = vld [vmem:[%s1 + $0x338] sm:$0xf]
    %v412 = vld [vmem:[%s1 + $0x33c] sm:$0xf]
    %v413 = vld [vmem:[%s1 + $0x340] sm:$0xf]
    %v414 = vld [vmem:[%s1 + $0x344] sm:$0xf]
    %v415 = vld [vmem:[%s1 + $0x348] sm:$0xf]
    %v416 = vld [vmem:[%s1 + $0x34c] sm:$0xf]
    %v417 = vld [vmem:[%s1 + $0x350] sm:$0xf]
    %v418 = vld [vmem:[%s1 + $0x354] sm:$0xf]
    %v419 = vld [vmem:[%s1 + $0x358] sm:$0xf]
    %v420 = vld [vmem:[%s1 + $0x35c] sm:$0xf]
    %v421 = vld [vmem:[%s1 + $0x360] sm:$0xf]
    %v422 = vld [vmem:[%s1 + $0x364] sm:$0xf]
    %v423 = vld [vmem:[%s1 + $0x368] sm:$0xf]
    %v424 = vld [vmem:[%s1 + $0x36c] sm:$0xf]
    %v425 = vld [vmem:[%s1 + $0x370] sm:$0xf]
    %v426 = vld [vmem:[%s1 + $0x374] sm:$0xf]
    %v427 = vld [vmem:[%s1 + $0x378] sm:$0xf]
    %v428 = vld [vmem:[%s1 + $0x37c] sm:$0xf]
    %v429 = vld [vmem:[%s1 + $0x380] sm:$0xf]
    %v430 = vld [vmem:[%s1 + $0x384] sm:$0xf]
    %v431 = vld [vmem:[%s1 + $0x388] sm:$0xf]
    %v432 = vld [vmem:[%s1 + $0x38c] sm:$0xf]
    %v433 = vld [vmem:[%s1 + $0x390] sm:$0xf]
    %v434 = vld [vmem:[%s1 + $0x394] sm:$0xf]
    %v435 = vld [vmem:[%s1 + $0x398] sm:$0xf]
    %v436 = vld [vmem:[%s1 + $0x39c] sm:$0xf]
    %v437 = vld [vmem:[%s1 + $0x3a0] sm:$0xf]
    %v438 = vld [vmem:[%s1 + $0x3a4] sm:$0xf]
    %v439 = vld [vmem:[%s1 + $0x3a8] sm:$0xf]
    %v440 = vld [vmem:[%s1 + $0x3ac] sm:$0xf]
    %v441 = vld [vmem:[%s1 + $0x3b0] sm:$0xf]
    %v442 = vld [vmem:[%s1 + $0x3b4] sm:$0xf]
    %v443 = vld [vmem:[%s1 + $0x3b8] sm:$0xf]
    %v444 = vld [vmem:[%s1 + $0x3bc] sm:$0xf]
    %v445 = vld [vmem:[%s1 + $0x3c0] sm:$0xf]
    %v446 = vld [vmem:[%s1 + $0x3c4] sm:$0xf]
    %v447 = vld [vmem:[%s1 + $0x3c8] sm:$0xf]
    %v448 = vld [vmem:[%s1 + $0x3cc] sm:$0xf]
    %v449 = vld [vmem:[%s1 + $0x3d0] sm:$0xf]
    %v450 = vld [vmem:[%s1 + $0x3d4] sm:$0xf]
    %v451 = vld [vmem:[%s1 + $0x3d8] sm:$0xf]
    %v452 = vld [vmem:[%s1 + $0x3dc] sm:$0xf]
    %v453 = vld [vmem:[%s1 + $0x3e0] sm:$0xf]
    %v454 = vld [vmem:[%s1 + $0x3e4] sm:$0xf]
    %v455 = vld [vmem:[%s1 + $0x3e8] sm:$0xf]
    %v456 = vld [vmem:[%s1 + $0x3ec] sm:$0xf]
    %v457 = vld [vmem:[%s1 + $0x3f0] sm:$0xf]
    %v458 = vld [vmem:[%s1 + $0x3f4] sm:$0xf]
    %v459 = vld [vmem:[%s1 + $0x3f8] sm:$0xf]
    %v460 = vld [vmem:[%s1 + $0x3fc] sm:$0xf]
    %v461 = vld [vmem:[%s1 + $0x400] sm:$0xf]
    %v462 = vld [vmem:[%s1 + $0x404] sm:$0xf]
    %v463 = vld [vmem:[%s1 + $0x408] sm:$0xf]
    %v464 = vld [vmem:[%s1 + $0x40c] sm:$0xf]
    %v465 = vld [vmem:[%s1 + $0x410] sm:$0xf]
    %v466 = vld [vmem:[%s1 + $0x414] sm:$0xf]
    %v467 = vld [vmem:[%s1 + $0x418] sm:$0xf]
    %v468 = vld [vmem:[%s1 + $0x41c] sm:$0xf]
    %v469 = vld [vmem:[%s1 + $0x420] sm:$0xf]
    %v470 = vld [vmem:[%s1 + $0x424] sm:$0xf]
    %v471 = vld [vmem:[%s1 + $0x428] sm:$0xf]
    %v472 = vld [vmem:[%s1 + $0x42c] sm:$0xf]
    %v473 = vld [vmem:[%s1 + $0x430] sm:$0xf]
    %v474 = vld [vmem:[%s1 + $0x434] sm:$0xf]
    %v475 = vld [vmem:[%s1 + $0x438] sm:$0xf]
    %v476 = vld [vmem:[%s1 + $0x43c] sm:$0xf]
    %v477 = vld [vmem:[%s1 + $0x440] sm:$0xf]
    %v478 = vld [vmem:[%s1 + $0x444] sm:$0xf]
    %v479 = vld [vmem:[%s1 + $0x448] sm:$0xf]
    %v480 = vld [vmem:[%s1 + $0x44c] sm:$0xf]
    %v481 = vld [vmem:[%s1 + $0x450] sm:$0xf]
    %v482 = vld [vmem:[%s1 + $0x454] sm:$0xf]
    %v483 = vld [vmem:[%s1 + $0x458] sm:$0xf]
    %v484 = vld [vmem:[%s1 + $0x45c] sm:$0xf]
    %v485 = vld [vmem:[%s1 + $0x460] sm:$0xf]
    %v486 = vld [vmem:[%s1 + $0x464] sm:$0xf]
    %v487 = vld [vmem:[%s1 + $0x468] sm:$0xf]
    %v488 = vld [vmem:[%s1 + $0x46c] sm:$0xf]
    %v489 = vld [vmem:[%s1 + $0x470] sm:$0xf]
    %v490 = vld [vmem:[%s1 + $0x474] sm:$0xf]
    %v491 = vld [vmem:[%s1 + $0x478] sm:$0xf]
    %v492 = vld [vmem:[%s1 + $0x47c] sm:$0xf]
    %v493 = vld [vmem:[%s1 + $0x480] sm:$0xf]
    %v494 = vld [vmem:[%s1 + $0x484] sm:$0xf]
    %v495 = vld [vmem:[%s1 + $0x488] sm:$0xf]
    %v496 = vld [vmem:[%s1 + $0x48c] sm:$0xf]
    %v497 = vld [vmem:[%s1 + $0x490] sm:$0xf]
    %v498 = vld [vmem:[%s1 + $0x494] sm:$0xf]
    %v499 = vld [vmem:[%s1 + $0x498] sm:$0xf]
    %v500 = vld [vmem:[%s1 + $0x49c] sm:$0xf]
    %v501 = vld [vmem:[%s1 + $0x4a0] sm:$0xf]
    %v502 = vld [vmem:[%s1 + $0x4a4] sm:$0xf]
    %v503 = vld [vmem:[%s1 + $0x4a8] sm:$0xf]
    %v504 = vld [vmem:[%s1 + $0x4ac] sm:$0xf]
    %v505 = vld [vmem:[%s1 + $0x4b0] sm:$0xf]
    %v506 = vld [vmem:[%s1 + $0x4b4] sm:$0xf]
    %v507 = vld [vmem:[%s1 + $0x4b8] sm:$0xf]
    %v508 = vld [vmem:[%s1 + $0x4bc] sm:$0xf]
    %v509 = vld [vmem:[%s1 + $0x4c0] sm:$0xf]
    %v510 = vld [vmem:[%s1 + $0x4c4] sm:$0xf]
    %v511 = vld [vmem:[%s1 + $0x4c8] sm:$0xf]
    %v512 = vld [vmem:[%s1 + $0x4cc] sm:$0xf]
    %v513 = vld [vmem:[%s1 + $0x4d0] sm:$0xf]
    %v514 = vld [vmem:[%s1 + $0x4d4] sm:$0xf]
    %v515 = vld [vmem:[%s1 + $0x4d8] sm:$0xf]
    %v516 = vld [vmem:[%s1 + $0x4dc] sm:$0xf]
    %v517 = vld [vmem:[%s1 + $0x4e0] sm:$0xf]
    %v518 = vld [vmem:[%s1 + $0x4e4] sm:$0xf]
    %v519 = vld [vmem:[%s1 + $0x4e8] sm:$0xf]
    %v520 = vld [vmem:[%s1 + $0x4ec] sm:$0xf]
    %v521 = vld [vmem:[%s1 + $0x4f0] sm:$0xf]
    %v522 = vld [vmem:[%s1 + $0x4f4] sm:$0xf]
    %v523 = vld [vmem:[%s1 + $0x4f8] sm:$0xf]
    %v524 = vld [vmem:[%s1 + $0x4fc] sm:$0xf]
    %v525 = vld [vmem:[%s1 + $0x500] sm:$0xf]
    %v526 = vld [vmem:[%s1 + $0x504] sm:$0xf]
    %v527 = vld [vmem:[%s1 + $0x508] sm:$0xf]
    %v528 = vld [vmem:[%s1 + $0x50c] sm:$0xf]
    %v529 = vld [vmem:[%s1 + $0x510] sm:$0xf]
    %v530 = vld [vmem:[%s1 + $0x514] sm:$0xf]
    %v531 = vld [vmem:[%s1 + $0x518] sm:$0xf]
    %v532 = vld [vmem:[%s1 + $0x51c] sm:$0xf]
    %v533 = vld [vmem:[%s1 + $0x520] sm:$0xf]
    %v534 = vld [vmem:[%s1 + $0x524] sm:$0xf]
    %v535 = vld [vmem:[%s1 + $0x528] sm:$0xf]
    %v536 = vld [vmem:[%s1 + $0x52c] sm:$0xf]
    %v537 = vld [vmem:[%s1 + $0x530] sm:$0xf]
    %v538 = vld [vmem:[%s1 + $0x534] sm:$0xf]
    %v539 = vld [vmem:[%s1 + $0x538] sm:$0xf]
    %v540 = vld [vmem:[%s1 + $0x53c] sm:$0xf]
    %v541 = vld [vmem:[%s1 + $0x540] sm:$0xf]
    %v542 = vld [vmem:[%s1 + $0x544] sm:$0xf]
    %v543 = vld [vmem:[%s1 + $0x548] sm:$0xf]
    %v544 = vld [vmem:[%s1 + $0x54c] sm:$0xf]
    %v545 = vld [vmem:[%s1 + $0x550] sm:$0xf]
    %v546 = vld [vmem:[%s1 + $0x554] sm:$0xf]
    %v547 = vld [vmem:[%s1 + $0x558] sm:$0xf]
    %v548 = vld [vmem:[%s1 + $0x55c] sm:$0xf]
    %v549 = vld [vmem:[%s1 + $0x560] sm:$0xf]
    %v550 = vld [vmem:[%s1 + $0x564] sm:$0xf]
    %v551 = vld [vmem:[%s1 + $0x568] sm:$0xf]
    %v552 = vld [vmem:[%s1 + $0x56c] sm:$0xf]
    %v553 = vld [vmem:[%s1 + $0x570] sm:$0xf]
    %v554 = vld [vmem:[%s1 + $0x574] sm:$0xf]
    %v555 = vld [vmem:[%s1 + $0x578] sm:$0xf]
    %v556 = vld [vmem:[%s1 + $0x57c] sm:$0xf]
    %v557 = vld [vmem:[%s1 + $0x580] sm:$0xf]
    %v558 = vld [vmem:[%s1 + $0x584] sm:$0xf]
    %v559 = vld [vmem:[%s1 + $0x588] sm:$0xf]
    %v560 = vld [vmem:[%s1 + $0x58c] sm:$0xf]
    %v561 = vld [vmem:[%s1 + $0x590] sm:$0xf]
    %v562 = vld [vmem:[%s1 + $0x594] sm:$0xf]
    %v563 = vld [vmem:[%s1 + $0x598] sm:$0xf]
    %v564 = vld [vmem:[%s1 + $0x59c] sm:$0xf]
    %v565 = vld [vmem:[%s1 + $0x5a0] sm:$0xf]
    %v566 = vld [vmem:[%s1 + $0x5a4] sm:$0xf]
    %v567 = vld [vmem:[%s1 + $0x5a8] sm:$0xf]
    %v568 = vld [vmem:[%s1 + $0x5ac] sm:$0xf]
    %v569 = vld [vmem:[%s1 + $0x5b0] sm:$0xf]
    %v570 = vld [vmem:[%s1 + $0x5b4] sm:$0xf]
    %v571 = vld [vmem:[%s1 + $0x5b8] sm:$0xf]
    %v572 = vld [vmem:[%s1 + $0x5bc] sm:$0xf]
    %v573 = vld [vmem:[%s1 + $0x5c0] sm:$0xf]
    %v574 = vld [vmem:[%s1 + $0x5c4] sm:$0xf]
    %v575 = vld [vmem:[%s1 + $0x5c8] sm:$0xf]
    %v576 = vld [vmem:[%s1 + $0x5cc] sm:$0xf]
    %v577 = vld [vmem:[%s1 + $0x5d0] sm:$0xf]
    %v578 = vld [vmem:[%s1 + $0x5d4] sm:$0xf]
    %v579 = vld [vmem:[%s1 + $0x5d8] sm:$0xf]
    %v580 = vld [vmem:[%s1 + $0x5dc] sm:$0xf]
    %v581 = vld [vmem:[%s1 + $0x5e0] sm:$0xf]
    %v582 = vld [vmem:[%s1 + $0x5e4] sm:$0xf]
    %v583 = vld [vmem:[%s1 + $0x5e8] sm:$0xf]
    %v584 = vld [vmem:[%s1 + $0x5ec] sm:$0xf]
    %v585 = vld [vmem:[%s1 + $0x5f0] sm:$0xf]
    %v586 = vld [vmem:[%s1 + $0x5f4] sm:$0xf]
    %v587 = vld [vmem:[%s1 + $0x5f8] sm:$0xf]
    %v588 = vld [vmem:[%s1 + $0x5fc] sm:$0xf]
    %v589 = vlaneseq
    %v590 = vshrl.u32 %v589, 7
    %v591 = vsub.s32 0, %v590
    %v592 = vrot.slane %v31, %v591
    %v977 = vunpack.c.l.b16 %v205
    %v978 = vunpack.c.l.b16 %v206
    %v979 = vunpack.c.l.b16 %v207
    %v980 = vunpack.c.l.b16 %v208
    %v981 = vunpack.c.l.b16 %v209
    %v982 = vunpack.c.l.b16 %v210
    %v983 = vunpack.c.l.b16 %v211
    %v984 = vunpack.c.l.b16 %v212
    %v985 = vunpack.c.l.b16 %v213
    %v986 = vunpack.c.l.b16 %v214
    %v987 = vunpack.c.l.b16 %v215
    %v988 = vunpack.c.l.b16 %v216
    %v989 = vunpack.c.l.b16 %v217
    %v990 = vunpack.c.l.b16 %v218
    %v991 = vunpack.c.l.b16 %v219
    %v992 = vunpack.c.l.b16 %v220
    %v993 = vunpack.c.l.b16 %v221
    %v994 = vunpack.c.l.b16 %v222
    %v995 = vunpack.c.l.b16 %v223
    %v996 = vunpack.c.l.b16 %v224
    %v997 = vunpack.c.l.b16 %v225
    %v998 = vunpack.c.l.b16 %v226
    %v999 = vunpack.c.l.b16 %v227
    %v1000 = vunpack.c.l.b16 %v228
    %v1001 = vunpack.c.l.b16 %v229
    %v1002 = vunpack.c.l.b16 %v230
    %v1003 = vunpack.c.l.b16 %v231
    %v1004 = vunpack.c.l.b16 %v232
    %v1005 = vunpack.c.l.b16 %v233
    %v1006 = vunpack.c.l.b16 %v234
    %v1007 = vunpack.c.l.b16 %v235
    %v1008 = vunpack.c.l.b16 %v236
    %v1009 = vunpack.c.l.b16 %v237
    %v1010 = vunpack.c.l.b16 %v238
    %v1011 = vunpack.c.l.b16 %v239
    %v1012 = vunpack.c.l.b16 %v240
    %v1013 = vunpack.c.l.b16 %v241
    %v1014 = vunpack.c.l.b16 %v242
    %v1015 = vunpack.c.l.b16 %v243
    %v1016 = vunpack.c.l.b16 %v244
    %v1017 = vunpack.c.l.b16 %v245
    %v1018 = vunpack.c.l.b16 %v246
    %v1019 = vunpack.c.l.b16 %v247
    %v1020 = vunpack.c.l.b16 %v248
    %v1021 = vunpack.c.l.b16 %v249
    %v1022 = vunpack.c.l.b16 %v250
    %v1023 = vunpack.c.l.b16 %v251
    %v1024 = vunpack.c.l.b16 %v252
    %v1025 = vunpack.c.l.b16 %v253
    %v1026 = vunpack.c.l.b16 %v254
    %v1027 = vunpack.c.l.b16 %v255
    %v1028 = vunpack.c.l.b16 %v256
    %v1029 = vunpack.c.l.b16 %v257
    %v1030 = vunpack.c.l.b16 %v258
    %v1031 = vunpack.c.l.b16 %v259
    %v1032 = vunpack.c.l.b16 %v260
    %v1033 = vunpack.c.l.b16 %v261
    %v1034 = vunpack.c.l.b16 %v262
    %v1035 = vunpack.c.l.b16 %v263
    %v1036 = vunpack.c.l.b16 %v264
    %v1037 = vunpack.c.l.b16 %v265
    %v1038 = vunpack.c.l.b16 %v266
    %v1039 = vunpack.c.l.b16 %v267
    %v1040 = vunpack.c.l.b16 %v268
    %v1041 = vunpack.c.l.b16 %v269
    %v1042 = vunpack.c.l.b16 %v270
    %v1043 = vunpack.c.l.b16 %v271
    %v1044 = vunpack.c.l.b16 %v272
    %v1045 = vunpack.c.l.b16 %v273
    %v1046 = vunpack.c.l.b16 %v274
    %v1047 = vunpack.c.l.b16 %v275
    %v1048 = vunpack.c.l.b16 %v276
    %v1049 = vunpack.c.l.b16 %v277
    %v1050 = vunpack.c.l.b16 %v278
    %v1051 = vunpack.c.l.b16 %v279
    %v1052 = vunpack.c.l.b16 %v280
    %v1053 = vunpack.c.l.b16 %v281
    %v1054 = vunpack.c.l.b16 %v282
    %v1055 = vunpack.c.l.b16 %v283
    %v1056 = vunpack.c.l.b16 %v284
    %v1057 = vunpack.c.l.b16 %v285
    %v1058 = vunpack.c.l.b16 %v286
    %v1059 = vunpack.c.l.b16 %v287
    %v1060 = vunpack.c.l.b16 %v288
    %v1061 = vunpack.c.l.b16 %v289
    %v1062 = vunpack.c.l.b16 %v290
    %v1063 = vunpack.c.l.b16 %v291
    %v1064 = vunpack.c.l.b16 %v292
    %v1065 = vunpack.c.l.b16 %v293
    %v1066 = vunpack.c.l.b16 %v294
    %v1067 = vunpack.c.l.b16 %v295
    %v1068 = vunpack.c.l.b16 %v296
    %v1069 = vunpack.c.l.b16 %v297
    %v1070 = vunpack.c.l.b16 %v298
    %v1071 = vunpack.c.l.b16 %v299
    %v1072 = vunpack.c.l.b16 %v300
    %v1073 = vunpack.c.l.b16 %v301
    %v1074 = vunpack.c.l.b16 %v302
    %v1075 = vunpack.c.l.b16 %v303
    %v1076 = vunpack.c.l.b16 %v304
    %v1077 = vunpack.c.l.b16 %v305
    %v1078 = vunpack.c.l.b16 %v306
    %v1079 = vunpack.c.l.b16 %v307
    %v1080 = vunpack.c.l.b16 %v308
    %v1081 = vunpack.c.l.b16 %v309
    %v1082 = vunpack.c.l.b16 %v310
    %v1083 = vunpack.c.l.b16 %v311
    %v1084 = vunpack.c.l.b16 %v312
    %v1085 = vunpack.c.l.b16 %v313
    %v1086 = vunpack.c.l.b16 %v314
    %v1087 = vunpack.c.l.b16 %v315
    %v1088 = vunpack.c.l.b16 %v316
    %v1089 = vunpack.c.l.b16 %v317
    %v1090 = vunpack.c.l.b16 %v318
    %v1091 = vunpack.c.l.b16 %v319
    %v1092 = vunpack.c.l.b16 %v320
    %v1093 = vunpack.c.l.b16 %v321
    %v1094 = vunpack.c.l.b16 %v322
    %v1095 = vunpack.c.l.b16 %v323
    %v1096 = vunpack.c.l.b16 %v324
    %v1097 = vunpack.c.l.b16 %v325
    %v1098 = vunpack.c.l.b16 %v326
    %v1099 = vunpack.c.l.b16 %v327
    %v1100 = vunpack.c.l.b16 %v328
    %v1101 = vunpack.c.l.b16 %v329
    %v1102 = vunpack.c.l.b16 %v330
    %v1103 = vunpack.c.l.b16 %v331
    %v1104 = vunpack.c.l.b16 %v332
    %v1105 = vunpack.c.l.b16 %v333
    %v1106 = vunpack.c.l.b16 %v334
    %v1107 = vunpack.c.l.b16 %v335
    %v1108 = vunpack.c.l.b16 %v336
    %v1109 = vunpack.c.l.b16 %v337
    %v1110 = vunpack.c.l.b16 %v338
    %v1111 = vunpack.c.l.b16 %v339
    %v1112 = vunpack.c.l.b16 %v340
    %v1113 = vunpack.c.l.b16 %v341
    %v1114 = vunpack.c.l.b16 %v342
    %v1115 = vunpack.c.l.b16 %v343
    %v1116 = vunpack.c.l.b16 %v344
    %v1117 = vunpack.c.l.b16 %v345
    %v1118 = vunpack.c.l.b16 %v346
    %v1119 = vunpack.c.l.b16 %v347
    %v1120 = vunpack.c.l.b16 %v348
    %v1121 = vunpack.c.l.b16 %v349
    %v1122 = vunpack.c.l.b16 %v350
    %v1123 = vunpack.c.l.b16 %v351
    %v1124 = vunpack.c.l.b16 %v352
    %v1125 = vunpack.c.l.b16 %v353
    %v1126 = vunpack.c.l.b16 %v354
    %v1127 = vunpack.c.l.b16 %v355
    %v1128 = vunpack.c.l.b16 %v356
    %v1129 = vunpack.c.l.b16 %v357
    %v1130 = vunpack.c.l.b16 %v358
    %v1131 = vunpack.c.l.b16 %v359
    %v1132 = vunpack.c.l.b16 %v360
    %v1133 = vunpack.c.l.b16 %v361
    %v1134 = vunpack.c.l.b16 %v362
    %v1135 = vunpack.c.l.b16 %v363
    %v1136 = vunpack.c.l.b16 %v364
    %v1137 = vunpack.c.l.b16 %v365
    %v1138 = vunpack.c.l.b16 %v366
    %v1139 = vunpack.c.l.b16 %v367
    %v1140 = vunpack.c.l.b16 %v368
    %v1141 = vunpack.c.l.b16 %v369
    %v1142 = vunpack.c.l.b16 %v370
    %v1143 = vunpack.c.l.b16 %v371
    %v1144 = vunpack.c.l.b16 %v372
    %v1145 = vunpack.c.l.b16 %v373
    %v1146 = vunpack.c.l.b16 %v374
    %v1147 = vunpack.c.l.b16 %v375
    %v1148 = vunpack.c.l.b16 %v376
    %v1149 = vunpack.c.l.b16 %v377
    %v1150 = vunpack.c.l.b16 %v378
    %v1151 = vunpack.c.l.b16 %v379
    %v1152 = vunpack.c.l.b16 %v380
    %v1153 = vunpack.c.l.b16 %v381
    %v1154 = vunpack.c.l.b16 %v382
    %v1155 = vunpack.c.l.b16 %v383
    %v1156 = vunpack.c.l.b16 %v384
    %v1157 = vunpack.c.l.b16 %v385
    %v1158 = vunpack.c.l.b16 %v386
    %v1159 = vunpack.c.l.b16 %v387
    %v1160 = vunpack.c.l.b16 %v388
    %v1161 = vunpack.c.l.b16 %v389
    %v1162 = vunpack.c.l.b16 %v390
    %v1163 = vunpack.c.l.b16 %v391
    %v1164 = vunpack.c.l.b16 %v392
    %v1165 = vunpack.c.l.b16 %v393
    %v1166 = vunpack.c.l.b16 %v394
    %v1167 = vunpack.c.l.b16 %v395
    %v1168 = vunpack.c.l.b16 %v396
    %v1169 = vunpack.c.l.b16 %v397
    %v1170 = vunpack.c.l.b16 %v398
    %v1171 = vunpack.c.l.b16 %v399
    %v1172 = vunpack.c.l.b16 %v400
    %v1173 = vunpack.c.l.b16 %v401
    %v1174 = vunpack.c.l.b16 %v402
    %v1175 = vunpack.c.l.b16 %v403
    %v1176 = vunpack.c.l.b16 %v404
    %v1177 = vunpack.c.l.b16 %v405
    %v1178 = vunpack.c.l.b16 %v406
    %v1179 = vunpack.c.l.b16 %v407
    %v1180 = vunpack.c.l.b16 %v408
    %v1181 = vunpack.c.l.b16 %v409
    %v1182 = vunpack.c.l.b16 %v410
    %v1183 = vunpack.c.l.b16 %v411
    %v1184 = vunpack.c.l.b16 %v412
    %v1185 = vunpack.c.l.b16 %v413
    %v1186 = vunpack.c.l.b16 %v414
    %v1187 = vunpack.c.l.b16 %v415
    %v1188 = vunpack.c.l.b16 %v416
    %v1189 = vunpack.c.l.b16 %v417
    %v1190 = vunpack.c.l.b16 %v418
    %v1191 = vunpack.c.l.b16 %v419
    %v1192 = vunpack.c.l.b16 %v420
    %v1193 = vunpack.c.l.b16 %v421
    %v1194 = vunpack.c.l.b16 %v422
    %v1195 = vunpack.c.l.b16 %v423
    %v1196 = vunpack.c.l.b16 %v424
    %v1197 = vunpack.c.l.b16 %v425
    %v1198 = vunpack.c.l.b16 %v426
    %v1199 = vunpack.c.l.b16 %v427
    %v1200 = vunpack.c.l.b16 %v428
    %v1201 = vunpack.c.l.b16 %v429
    %v1202 = vunpack.c.l.b16 %v430
    %v1203 = vunpack.c.l.b16 %v431
    %v1204 = vunpack.c.l.b16 %v432
    %v1205 = vunpack.c.l.b16 %v433
    %v1206 = vunpack.c.l.b16 %v434
    %v1207 = vunpack.c.l.b16 %v435
    %v1208 = vunpack.c.l.b16 %v436
    %v1209 = vunpack.c.l.b16 %v437
    %v1210 = vunpack.c.l.b16 %v438
    %v1211 = vunpack.c.l.b16 %v439
    %v1212 = vunpack.c.l.b16 %v440
    %v1213 = vunpack.c.l.b16 %v441
    %v1214 = vunpack.c.l.b16 %v442
    %v1215 = vunpack.c.l.b16 %v443
    %v1216 = vunpack.c.l.b16 %v444
    %v1217 = vunpack.c.l.b16 %v445
    %v1218 = vunpack.c.l.b16 %v446
    %v1219 = vunpack.c.l.b16 %v447
    %v1220 = vunpack.c.l.b16 %v448
    %v1221 = vunpack.c.l.b16 %v449
    %v1222 = vunpack.c.l.b16 %v450
    %v1223 = vunpack.c.l.b16 %v451
    %v1224 = vunpack.c.l.b16 %v452
    %v1225 = vunpack.c.l.b16 %v453
    %v1226 = vunpack.c.l.b16 %v454
    %v1227 = vunpack.c.l.b16 %v455
    %v1228 = vunpack.c.l.b16 %v456
    %v1229 = vunpack.c.l.b16 %v457
    %v1230 = vunpack.c.l.b16 %v458
    %v1231 = vunpack.c.l.b16 %v459
    %v1232 = vunpack.c.l.b16 %v460
    %v1233 = vunpack.c.l.b16 %v461
    %v1234 = vunpack.c.l.b16 %v462
    %v1235 = vunpack.c.l.b16 %v463
    %v1236 = vunpack.c.l.b16 %v464
    %v1237 = vunpack.c.l.b16 %v465
    %v1238 = vunpack.c.l.b16 %v466
    %v1239 = vunpack.c.l.b16 %v467
    %v1240 = vunpack.c.l.b16 %v468
    %v1241 = vunpack.c.l.b16 %v469
    %v1242 = vunpack.c.l.b16 %v470
    %v1243 = vunpack.c.l.b16 %v471
    %v1244 = vunpack.c.l.b16 %v472
    %v1245 = vunpack.c.l.b16 %v473
    %v1246 = vunpack.c.l.b16 %v474
    %v1247 = vunpack.c.l.b16 %v475
    %v1248 = vunpack.c.l.b16 %v476
    %v1249 = vunpack.c.l.b16 %v477
    %v1250 = vunpack.c.l.b16 %v478
    %v1251 = vunpack.c.l.b16 %v479
    %v1252 = vunpack.c.l.b16 %v480
    %v1253 = vunpack.c.l.b16 %v481
    %v1254 = vunpack.c.l.b16 %v482
    %v1255 = vunpack.c.l.b16 %v483
    %v1256 = vunpack.c.l.b16 %v484
    %v1257 = vunpack.c.l.b16 %v485
    %v1258 = vunpack.c.l.b16 %v486
    %v1259 = vunpack.c.l.b16 %v487
    %v1260 = vunpack.c.l.b16 %v488
    %v1261 = vunpack.c.l.b16 %v489
    %v1262 = vunpack.c.l.b16 %v490
    %v1263 = vunpack.c.l.b16 %v491
    %v1264 = vunpack.c.l.b16 %v492
    %v1265 = vunpack.c.l.b16 %v493
    %v1266 = vunpack.c.l.b16 %v494
    %v1267 = vunpack.c.l.b16 %v495
    %v1268 = vunpack.c.l.b16 %v496
    %v1269 = vunpack.c.l.b16 %v497
    %v1270 = vunpack.c.l.b16 %v498
    %v1271 = vunpack.c.l.b16 %v499
    %v1272 = vunpack.c.l.b16 %v500
    %v1273 = vunpack.c.l.b16 %v501
    %v1274 = vunpack.c.l.b16 %v502
    %v1275 = vunpack.c.l.b16 %v503
    %v1276 = vunpack.c.l.b16 %v504
    %v1277 = vunpack.c.l.b16 %v505
    %v1278 = vunpack.c.l.b16 %v506
    %v1279 = vunpack.c.l.b16 %v507
    %v1280 = vunpack.c.l.b16 %v508
    %v1281 = vunpack.c.l.b16 %v509
    %v1282 = vunpack.c.l.b16 %v510
    %v1283 = vunpack.c.l.b16 %v511
    %v1284 = vunpack.c.l.b16 %v512
    %v1285 = vunpack.c.l.b16 %v513
    %v1286 = vunpack.c.l.b16 %v514
    %v1287 = vunpack.c.l.b16 %v515
    %v1288 = vunpack.c.l.b16 %v516
    %v1289 = vunpack.c.l.b16 %v517
    %v1290 = vunpack.c.l.b16 %v518
    %v1291 = vunpack.c.l.b16 %v519
    %v1292 = vunpack.c.l.b16 %v520
    %v1293 = vunpack.c.l.b16 %v521
    %v1294 = vunpack.c.l.b16 %v522
    %v1295 = vunpack.c.l.b16 %v523
    %v1296 = vunpack.c.l.b16 %v524
    %v1297 = vunpack.c.l.b16 %v525
    %v1298 = vunpack.c.l.b16 %v526
    %v1299 = vunpack.c.l.b16 %v527
    %v1300 = vunpack.c.l.b16 %v528
    %v1301 = vunpack.c.l.b16 %v529
    %v1302 = vunpack.c.l.b16 %v530
    %v1303 = vunpack.c.l.b16 %v531
    %v1304 = vunpack.c.l.b16 %v532
    %v1305 = vunpack.c.l.b16 %v533
    %v1306 = vunpack.c.l.b16 %v534
    %v1307 = vunpack.c.l.b16 %v535
    %v1308 = vunpack.c.l.b16 %v536
    %v1309 = vunpack.c.l.b16 %v537
    %v1310 = vunpack.c.l.b16 %v538
    %v1311 = vunpack.c.l.b16 %v539
    %v1312 = vunpack.c.l.b16 %v540
    %v1313 = vunpack.c.l.b16 %v541
    %v1314 = vunpack.c.l.b16 %v542
    %v1315 = vunpack.c.l.b16 %v543
    %v1316 = vunpack.c.l.b16 %v544
    %v1317 = vunpack.c.l.b16 %v545
    %v1318 = vunpack.c.l.b16 %v546
    %v1319 = vunpack.c.l.b16 %v547
    %v1320 = vunpack.c.l.b16 %v548
    %v1321 = vunpack.c.l.b16 %v549
    %v1322 = vunpack.c.l.b16 %v550
    %v1323 = vunpack.c.l.b16 %v551
    %v1324 = vunpack.c.l.b16 %v552
    %v1325 = vunpack.c.l.b16 %v553
    %v1326 = vunpack.c.l.b16 %v554
    %v1327 = vunpack.c.l.b16 %v555
    %v1328 = vunpack.c.l.b16 %v556
    %v1329 = vunpack.c.l.b16 %v557
    %v1330 = vunpack.c.l.b16 %v558
    %v1331 = vunpack.c.l.b16 %v559
    %v1332 = vunpack.c.l.b16 %v560
    %v1333 = vunpack.c.l.b16 %v561
    %v1334 = vunpack.c.l.b16 %v562
    %v1335 = vunpack.c.l.b16 %v563
    %v1336 = vunpack.c.l.b16 %v564
    %v1337 = vunpack.c.l.b16 %v565
    %v1338 = vunpack.c.l.b16 %v566
    %v1339 = vunpack.c.l.b16 %v567
    %v1340 = vunpack.c.l.b16 %v568
    %v1341 = vunpack.c.l.b16 %v569
    %v1342 = vunpack.c.l.b16 %v570
    %v1343 = vunpack.c.l.b16 %v571
    %v1344 = vunpack.c.l.b16 %v572
    %v1345 = vunpack.c.l.b16 %v573
    %v1346 = vunpack.c.l.b16 %v574
    %v1347 = vunpack.c.l.b16 %v575
    %v1348 = vunpack.c.l.b16 %v576
    %v1349 = vunpack.c.l.b16 %v577
    %v1350 = vunpack.c.l.b16 %v578
    %v1351 = vunpack.c.l.b16 %v579
    %v1352 = vunpack.c.l.b16 %v580
    %v1353 = vunpack.c.l.b16 %v581
    %v1354 = vunpack.c.l.b16 %v582
    %v1355 = vunpack.c.l.b16 %v583
    %v1356 = vunpack.c.l.b16 %v584
    %v1357 = vunpack.c.l.b16 %v585
    %v1358 = vunpack.c.l.b16 %v586
    %v1359 = vunpack.c.l.b16 %v587
    %v1360 = vunpack.c.l.b16 %v588
    %v1361 = vpack.c.b16 %v978, %v977
    %v1362 = vpack.c.b16 %v980, %v979
    %v1363 = vpack.c.b16 %v982, %v981
    %v1364 = vpack.c.b16 %v984, %v983
    %v1365 = vpack.c.b16 %v986, %v985
    %v1366 = vpack.c.b16 %v988, %v987
    %v1367 = vpack.c.b16 %v990, %v989
    %v1368 = vpack.c.b16 %v992, %v991
    %v1369 = vpack.c.b16 %v994, %v993
    %v1370 = vpack.c.b16 %v996, %v995
    %v1371 = vpack.c.b16 %v998, %v997
    %v1372 = vpack.c.b16 %v1000, %v999
    %v1373 = vpack.c.b16 %v1002, %v1001
    %v1374 = vpack.c.b16 %v1004, %v1003
    %v1375 = vpack.c.b16 %v1006, %v1005
    %v1376 = vpack.c.b16 %v1008, %v1007
    %v1377 = vpack.c.b16 %v1010, %v1009
    %v1378 = vpack.c.b16 %v1012, %v1011
    %v1379 = vpack.c.b16 %v1014, %v1013
    %v1380 = vpack.c.b16 %v1016, %v1015
    %v1381 = vpack.c.b16 %v1018, %v1017
    %v1382 = vpack.c.b16 %v1020, %v1019
    %v1383 = vpack.c.b16 %v1022, %v1021
    %v1384 = vpack.c.b16 %v1024, %v1023
    %v1385 = vpack.c.b16 %v1026, %v1025
    %v1386 = vpack.c.b16 %v1028, %v1027
    %v1387 = vpack.c.b16 %v1030, %v1029
    %v1388 = vpack.c.b16 %v1032, %v1031
    %v1389 = vpack.c.b16 %v1034, %v1033
    %v1390 = vpack.c.b16 %v1036, %v1035
    %v1391 = vpack.c.b16 %v1038, %v1037
    %v1392 = vpack.c.b16 %v1040, %v1039
    %v1393 = vpack.c.b16 %v1042, %v1041
    %v1394 = vpack.c.b16 %v1044, %v1043
    %v1395 = vpack.c.b16 %v1046, %v1045
    %v1396 = vpack.c.b16 %v1048, %v1047
    %v1397 = vpack.c.b16 %v1050, %v1049
    %v1398 = vpack.c.b16 %v1052, %v1051
    %v1399 = vpack.c.b16 %v1054, %v1053
    %v1400 = vpack.c.b16 %v1056, %v1055
    %v1401 = vpack.c.b16 %v1058, %v1057
    %v1402 = vpack.c.b16 %v1060, %v1059
    %v1403 = vpack.c.b16 %v1062, %v1061
    %v1404 = vpack.c.b16 %v1064, %v1063
    %v1405 = vpack.c.b16 %v1066, %v1065
    %v1406 = vpack.c.b16 %v1068, %v1067
    %v1407 = vpack.c.b16 %v1070, %v1069
    %v1408 = vpack.c.b16 %v1072, %v1071
    %v1409 = vpack.c.b16 %v1074, %v1073
    %v1410 = vpack.c.b16 %v1076, %v1075
    %v1411 = vpack.c.b16 %v1078, %v1077
    %v1412 = vpack.c.b16 %v1080, %v1079
    %v1413 = vpack.c.b16 %v1082, %v1081
    %v1414 = vpack.c.b16 %v1084, %v1083
    %v1415 = vpack.c.b16 %v1086, %v1085
    %v1416 = vpack.c.b16 %v1088, %v1087
    %v1417 = vpack.c.b16 %v1090, %v1089
    %v1418 = vpack.c.b16 %v1092, %v1091
    %v1419 = vpack.c.b16 %v1094, %v1093
    %v1420 = vpack.c.b16 %v1096, %v1095
    %v1421 = vpack.c.b16 %v1098, %v1097
    %v1422 = vpack.c.b16 %v1100, %v1099
    %v1423 = vpack.c.b16 %v1102, %v1101
    %v1424 = vpack.c.b16 %v1104, %v1103
    %v1425 = vpack.c.b16 %v1106, %v1105
    %v1426 = vpack.c.b16 %v1108, %v1107
    %v1427 = vpack.c.b16 %v1110, %v1109
    %v1428 = vpack.c.b16 %v1112, %v1111
    %v1429 = vpack.c.b16 %v1114, %v1113
    %v1430 = vpack.c.b16 %v1116, %v1115
    %v1431 = vpack.c.b16 %v1118, %v1117
    %v1432 = vpack.c.b16 %v1120, %v1119
    %v1433 = vpack.c.b16 %v1122, %v1121
    %v1434 = vpack.c.b16 %v1124, %v1123
    %v1435 = vpack.c.b16 %v1126, %v1125
    %v1436 = vpack.c.b16 %v1128, %v1127
    %v1437 = vpack.c.b16 %v1130, %v1129
    %v1438 = vpack.c.b16 %v1132, %v1131
    %v1439 = vpack.c.b16 %v1134, %v1133
    %v1440 = vpack.c.b16 %v1136, %v1135
    %v1441 = vpack.c.b16 %v1138, %v1137
    %v1442 = vpack.c.b16 %v1140, %v1139
    %v1443 = vpack.c.b16 %v1142, %v1141
    %v1444 = vpack.c.b16 %v1144, %v1143
    %v1445 = vpack.c.b16 %v1146, %v1145
    %v1446 = vpack.c.b16 %v1148, %v1147
    %v1447 = vpack.c.b16 %v1150, %v1149
    %v1448 = vpack.c.b16 %v1152, %v1151
    %v1449 = vpack.c.b16 %v1154, %v1153
    %v1450 = vpack.c.b16 %v1156, %v1155
    %v1451 = vpack.c.b16 %v1158, %v1157
    %v1452 = vpack.c.b16 %v1160, %v1159
    %v1453 = vpack.c.b16 %v1162, %v1161
    %v1454 = vpack.c.b16 %v1164, %v1163
    %v1455 = vpack.c.b16 %v1166, %v1165
    %v1456 = vpack.c.b16 %v1168, %v1167
    %v1457 = vpack.c.b16 %v1170, %v1169
    %v1458 = vpack.c.b16 %v1172, %v1171
    %v1459 = vpack.c.b16 %v1174, %v1173
    %v1460 = vpack.c.b16 %v1176, %v1175
    %v1461 = vpack.c.b16 %v1178, %v1177
    %v1462 = vpack.c.b16 %v1180, %v1179
    %v1463 = vpack.c.b16 %v1182, %v1181
    %v1464 = vpack.c.b16 %v1184, %v1183
    %v1465 = vpack.c.b16 %v1186, %v1185
    %v1466 = vpack.c.b16 %v1188, %v1187
    %v1467 = vpack.c.b16 %v1190, %v1189
    %v1468 = vpack.c.b16 %v1192, %v1191
    %v1469 = vpack.c.b16 %v1194, %v1193
    %v1470 = vpack.c.b16 %v1196, %v1195
    %v1471 = vpack.c.b16 %v1198, %v1197
    %v1472 = vpack.c.b16 %v1200, %v1199
    %v1473 = vpack.c.b16 %v1202, %v1201
    %v1474 = vpack.c.b16 %v1204, %v1203
    %v1475 = vpack.c.b16 %v1206, %v1205
    %v1476 = vpack.c.b16 %v1208, %v1207
    %v1477 = vpack.c.b16 %v1210, %v1209
    %v1478 = vpack.c.b16 %v1212, %v1211
    %v1479 = vpack.c.b16 %v1214, %v1213
    %v1480 = vpack.c.b16 %v1216, %v1215
    %v1481 = vpack.c.b16 %v1218, %v1217
    %v1482 = vpack.c.b16 %v1220, %v1219
    %v1483 = vpack.c.b16 %v1222, %v1221
    %v1484 = vpack.c.b16 %v1224, %v1223
    %v1485 = vpack.c.b16 %v1226, %v1225
    %v1486 = vpack.c.b16 %v1228, %v1227
    %v1487 = vpack.c.b16 %v1230, %v1229
    %v1488 = vpack.c.b16 %v1232, %v1231
    %v1489 = vpack.c.b16 %v1234, %v1233
    %v1490 = vpack.c.b16 %v1236, %v1235
    %v1491 = vpack.c.b16 %v1238, %v1237
    %v1492 = vpack.c.b16 %v1240, %v1239
    %v1493 = vpack.c.b16 %v1242, %v1241
    %v1494 = vpack.c.b16 %v1244, %v1243
    %v1495 = vpack.c.b16 %v1246, %v1245
    %v1496 = vpack.c.b16 %v1248, %v1247
    %v1497 = vpack.c.b16 %v1250, %v1249
    %v1498 = vpack.c.b16 %v1252, %v1251
    %v1499 = vpack.c.b16 %v1254, %v1253
    %v1500 = vpack.c.b16 %v1256, %v1255
    %v1501 = vpack.c.b16 %v1258, %v1257
    %v1502 = vpack.c.b16 %v1260, %v1259
    %v1503 = vpack.c.b16 %v1262, %v1261
    %v1504 = vpack.c.b16 %v1264, %v1263
    %v1505 = vpack.c.b16 %v1266, %v1265
    %v1506 = vpack.c.b16 %v1268, %v1267
    %v1507 = vpack.c.b16 %v1270, %v1269
    %v1508 = vpack.c.b16 %v1272, %v1271
    %v1509 = vpack.c.b16 %v1274, %v1273
    %v1510 = vpack.c.b16 %v1276, %v1275
    %v1511 = vpack.c.b16 %v1278, %v1277
    %v1512 = vpack.c.b16 %v1280, %v1279
    %v1513 = vpack.c.b16 %v1282, %v1281
    %v1514 = vpack.c.b16 %v1284, %v1283
    %v1515 = vpack.c.b16 %v1286, %v1285
    %v1516 = vpack.c.b16 %v1288, %v1287
    %v1517 = vpack.c.b16 %v1290, %v1289
    %v1518 = vpack.c.b16 %v1292, %v1291
    %v1519 = vpack.c.b16 %v1294, %v1293
    %v1520 = vpack.c.b16 %v1296, %v1295
    %v1521 = vpack.c.b16 %v1298, %v1297
    %v1522 = vpack.c.b16 %v1300, %v1299
    %v1523 = vpack.c.b16 %v1302, %v1301
    %v1524 = vpack.c.b16 %v1304, %v1303
    %v1525 = vpack.c.b16 %v1306, %v1305
    %v1526 = vpack.c.b16 %v1308, %v1307
    %v1527 = vpack.c.b16 %v1310, %v1309
    %v1528 = vpack.c.b16 %v1312, %v1311
    %v1529 = vpack.c.b16 %v1314, %v1313
    %v1530 = vpack.c.b16 %v1316, %v1315
    %v1531 = vpack.c.b16 %v1318, %v1317
    %v1532 = vpack.c.b16 %v1320, %v1319
    %v1533 = vpack.c.b16 %v1322, %v1321
    %v1534 = vpack.c.b16 %v1324, %v1323
    %v1535 = vpack.c.b16 %v1326, %v1325
    %v1536 = vpack.c.b16 %v1328, %v1327
    %v1537 = vpack.c.b16 %v1330, %v1329
    %v1538 = vpack.c.b16 %v1332, %v1331
    %v1539 = vpack.c.b16 %v1334, %v1333
    %v1540 = vpack.c.b16 %v1336, %v1335
    %v1541 = vpack.c.b16 %v1338, %v1337
    %v1542 = vpack.c.b16 %v1340, %v1339
    %v1543 = vpack.c.b16 %v1342, %v1341
    %v1544 = vpack.c.b16 %v1344, %v1343
    %v1545 = vpack.c.b16 %v1346, %v1345
    %v1546 = vpack.c.b16 %v1348, %v1347
    %v1547 = vpack.c.b16 %v1350, %v1349
    %v1548 = vpack.c.b16 %v1352, %v1351
    %v1549 = vpack.c.b16 %v1354, %v1353
    %v1550 = vpack.c.b16 %v1356, %v1355
    %v1551 = vpack.c.b16 %v1358, %v1357
    %v1552 = vpack.c.b16 %v1360, %v1359
    %1745 = vmatprep.subr.bf16.mxu0 0
    %1746 = vmatpush1.bf16.msra.mxu0 %v1368
    %1747 = vmatprep.subr.bf16.mxu0 0
    %1748 = vmatpush1.bf16.msra.mxu0 %v1367
    %1749 = vmatprep.subr.bf16.mxu0 0
    %1750 = vmatpush1.bf16.msra.mxu0 %v1366
    %1751 = vmatprep.subr.bf16.mxu0 0
    %1752 = vmatpush1.bf16.msra.mxu0 %v1365
    %1753 = vmatprep.subr.bf16.mxu0 0
    %1754 = vmatpush1.bf16.msra.mxu0 %v1364
    %1755 = vmatprep.subr.bf16.mxu0 0
    %1756 = vmatpush1.bf16.msra.mxu0 %v1363
    %1757 = vmatprep.subr.bf16.mxu0 0
    %1758 = vmatpush1.bf16.msra.mxu0 %v1362
    %1759 = vmatprep.subr.bf16.mxu0 0
    %1760 = vmatpush1.bf16.msra.mxu0 %v1361
    %1761 = vmatprep.subr.bf16.mxu0 0
    %1762 = vmatpush2.bf16.msra.mxu0 %v1376
    %1763 = vmatprep.subr.bf16.mxu0 0
    %1764 = vmatpush2.bf16.msra.mxu0 %v1375
    %1765 = vmatprep.subr.bf16.mxu0 0
    %1766 = vmatpush2.bf16.msra.mxu0 %v1374
    %1767 = vmatprep.subr.bf16.mxu0 0
    %1768 = vmatpush2.bf16.msra.mxu0 %v1373
    %1769 = vmatprep.subr.bf16.mxu0 0
    %1770 = vmatpush2.bf16.msra.mxu0 %v1372
    %1771 = vmatprep.subr.bf16.mxu0 0
    %1772 = vmatpush2.bf16.msra.mxu0 %v1371
    %1773 = vmatprep.subr.bf16.mxu0 0
    %1774 = vmatpush2.bf16.msra.mxu0 %v1370
    %1775 = vmatprep.subr.bf16.mxu0 0
    %1776 = vmatpush2.bf16.msra.mxu0 %v1369
    %1777 = vmatprep.mubr.bf16.mxu0 %v182
    %1778 = vmatmul.mubr.bf16.gmra.mxu0 %v181
    %v1779 = vpop.f32.mrf.mxu0
    %v1780 = vadd.f32 %v592, %v1779
    %v1781 = vpop.f32.mrf.mxu0
    %v1782 = vpop.f32.mrf.mxu0
    %v1783 = vpop.f32.mrf.mxu0
    %1784 = vdwg.mxu0
    %1785 = vmatprep.subr.bf16.mxu0 0
    %1786 = vmatpush1.bf16.msra.mxu0 %v1384
    %1787 = vmatprep.subr.bf16.mxu0 0
    %1788 = vmatpush1.bf16.msra.mxu0 %v1383
    %1789 = vmatprep.subr.bf16.mxu0 0
    %1790 = vmatpush1.bf16.msra.mxu0 %v1382
    %1791 = vmatprep.subr.bf16.mxu0 0
    %1792 = vmatpush1.bf16.msra.mxu0 %v1381
    %1793 = vmatprep.subr.bf16.mxu0 0
    %1794 = vmatpush1.bf16.msra.mxu0 %v1380
    %1795 = vmatprep.subr.bf16.mxu0 0
    %1796 = vmatpush1.bf16.msra.mxu0 %v1379
    %1797 = vmatprep.subr.bf16.mxu0 0
    %1798 = vmatpush1.bf16.msra.mxu0 %v1378
    %1799 = vmatprep.subr.bf16.mxu0 0
    %1800 = vmatpush1.bf16.msra.mxu0 %v1377
    %1801 = vmatprep.subr.bf16.mxu0 0
    %1802 = vmatpush2.bf16.msra.mxu0 %v1392
    %1803 = vmatprep.subr.bf16.mxu0 0
    %1804 = vmatpush2.bf16.msra.mxu0 %v1391
    %1805 = vmatprep.subr.bf16.mxu0 0
    %1806 = vmatpush2.bf16.msra.mxu0 %v1390
    %1807 = vmatprep.subr.bf16.mxu0 0
    %1808 = vmatpush2.bf16.msra.mxu0 %v1389
    %1809 = vmatprep.subr.bf16.mxu0 0
    %1810 = vmatpush2.bf16.msra.mxu0 %v1388
    %1811 = vmatprep.subr.bf16.mxu0 0
    %1812 = vmatpush2.bf16.msra.mxu0 %v1387
    %1813 = vmatprep.subr.bf16.mxu0 0
    %1814 = vmatpush2.bf16.msra.mxu0 %v1386
    %1815 = vmatprep.subr.bf16.mxu0 0
    %1816 = vmatpush2.bf16.msra.mxu0 %v1385
    %1817 = vmatprep.mubr.bf16.mxu0 %v184
    %1818 = vmatmul.mubr.bf16.gmra.mxu0 %v183
    %v1819 = vpop.f32.mrf.mxu0
    %v1820 = vadd.f32 %v1780, %v1819
    %v1821 = vpop.f32.mrf.mxu0
    %v1822 = vpop.f32.mrf.mxu0
    %v1823 = vpop.f32.mrf.mxu0
    %1824 = vdwg.mxu0
    %1825 = vmatprep.subr.bf16.mxu0 0
    %1826 = vmatpush1.bf16.msra.mxu0 %v1400
    %1827 = vmatprep.subr.bf16.mxu0 0
    %1828 = vmatpush1.bf16.msra.mxu0 %v1399
    %1829 = vmatprep.subr.bf16.mxu0 0
    %1830 = vmatpush1.bf16.msra.mxu0 %v1398
    %1831 = vmatprep.subr.bf16.mxu0 0
    %1832 = vmatpush1.bf16.msra.mxu0 %v1397
    %1833 = vmatprep.subr.bf16.mxu0 0
    %1834 = vmatpush1.bf16.msra.mxu0 %v1396
    %1835 = vmatprep.subr.bf16.mxu0 0
    %1836 = vmatpush1.bf16.msra.mxu0 %v1395
    %1837 = vmatprep.subr.bf16.mxu0 0
    %1838 = vmatpush1.bf16.msra.mxu0 %v1394
    %1839 = vmatprep.subr.bf16.mxu0 0
    %1840 = vmatpush1.bf16.msra.mxu0 %v1393
    %1841 = vmatprep.subr.bf16.mxu0 0
    %1842 = vmatpush2.bf16.msra.mxu0 %v1408
    %1843 = vmatprep.subr.bf16.mxu0 0
    %1844 = vmatpush2.bf16.msra.mxu0 %v1407
    %1845 = vmatprep.subr.bf16.mxu0 0
    %1846 = vmatpush2.bf16.msra.mxu0 %v1406
    %1847 = vmatprep.subr.bf16.mxu0 0
    %1848 = vmatpush2.bf16.msra.mxu0 %v1405
    %1849 = vmatprep.subr.bf16.mxu0 0
    %1850 = vmatpush2.bf16.msra.mxu0 %v1404
    %1851 = vmatprep.subr.bf16.mxu0 0
    %1852 = vmatpush2.bf16.msra.mxu0 %v1403
    %1853 = vmatprep.subr.bf16.mxu0 0
    %1854 = vmatpush2.bf16.msra.mxu0 %v1402
    %1855 = vmatprep.subr.bf16.mxu0 0
    %1856 = vmatpush2.bf16.msra.mxu0 %v1401
    %1857 = vmatprep.mubr.bf16.mxu0 %v186
    %1858 = vmatmul.mubr.bf16.gmra.mxu0 %v185
    %v1859 = vpop.f32.mrf.mxu0
    %v1860 = vadd.f32 %v1820, %v1859
    %v1861 = vpop.f32.mrf.mxu0
    %v1862 = vpop.f32.mrf.mxu0
    %v1863 = vpop.f32.mrf.mxu0
    %1864 = vdwg.mxu0
    %1865 = vmatprep.subr.bf16.mxu0 0
    %1866 = vmatpush1.bf16.msra.mxu0 %v1416
    %1867 = vmatprep.subr.bf16.mxu0 0
    %1868 = vmatpush1.bf16.msra.mxu0 %v1415
    %1869 = vmatprep.subr.bf16.mxu0 0
    %1870 = vmatpush1.bf16.msra.mxu0 %v1414
    %1871 = vmatprep.subr.bf16.mxu0 0
    %1872 = vmatpush1.bf16.msra.mxu0 %v1413
    %1873 = vmatprep.subr.bf16.mxu0 0
    %1874 = vmatpush1.bf16.msra.mxu0 %v1412
    %1875 = vmatprep.subr.bf16.mxu0 0
    %1876 = vmatpush1.bf16.msra.mxu0 %v1411
    %1877 = vmatprep.subr.bf16.mxu0 0
    %1878 = vmatpush1.bf16.msra.mxu0 %v1410
    %1879 = vmatprep.subr.bf16.mxu0 0
    %1880 = vmatpush1.bf16.msra.mxu0 %v1409
    %1881 = vmatprep.subr.bf16.mxu0 0
    %1882 = vmatpush2.bf16.msra.mxu0 %v1424
    %1883 = vmatprep.subr.bf16.mxu0 0
    %1884 = vmatpush2.bf16.msra.mxu0 %v1423
    %1885 = vmatprep.subr.bf16.mxu0 0
    %1886 = vmatpush2.bf16.msra.mxu0 %v1422
    %1887 = vmatprep.subr.bf16.mxu0 0
    %1888 = vmatpush2.bf16.msra.mxu0 %v1421
    %1889 = vmatprep.subr.bf16.mxu0 0
    %1890 = vmatpush2.bf16.msra.mxu0 %v1420
    %1891 = vmatprep.subr.bf16.mxu0 0
    %1892 = vmatpush2.bf16.msra.mxu0 %v1419
    %1893 = vmatprep.subr.bf16.mxu0 0
    %1894 = vmatpush2.bf16.msra.mxu0 %v1418
    %1895 = vmatprep.subr.bf16.mxu0 0
    %1896 = vmatpush2.bf16.msra.mxu0 %v1417
    %1897 = vmatprep.mubr.bf16.mxu0 %v188
    %1898 = vmatmul.mubr.bf16.gmra.mxu0 %v187
    %v1899 = vpop.f32.mrf.mxu0
    %v1900 = vadd.f32 %v1860, %v1899
    %v1901 = vpop.f32.mrf.mxu0
    %v1902 = vpop.f32.mrf.mxu0
    %v1903 = vpop.f32.mrf.mxu0
    %1904 = vdwg.mxu0
    %1905 = vmatprep.subr.bf16.mxu0 0
    %1906 = vmatpush1.bf16.msra.mxu0 %v1432
    %1907 = vmatprep.subr.bf16.mxu0 0
    %1908 = vmatpush1.bf16.msra.mxu0 %v1431
    %1909 = vmatprep.subr.bf16.mxu0 0
    %1910 = vmatpush1.bf16.msra.mxu0 %v1430
    %1911 = vmatprep.subr.bf16.mxu0 0
    %1912 = vmatpush1.bf16.msra.mxu0 %v1429
    %1913 = vmatprep.subr.bf16.mxu0 0
    %1914 = vmatpush1.bf16.msra.mxu0 %v1428
    %1915 = vmatprep.subr.bf16.mxu0 0
    %1916 = vmatpush1.bf16.msra.mxu0 %v1427
    %1917 = vmatprep.subr.bf16.mxu0 0
    %1918 = vmatpush1.bf16.msra.mxu0 %v1426
    %1919 = vmatprep.subr.bf16.mxu0 0
    %1920 = vmatpush1.bf16.msra.mxu0 %v1425
    %1921 = vmatprep.subr.bf16.mxu0 0
    %1922 = vmatpush2.bf16.msra.mxu0 %v1440
    %1923 = vmatprep.subr.bf16.mxu0 0
    %1924 = vmatpush2.bf16.msra.mxu0 %v1439
    %1925 = vmatprep.subr.bf16.mxu0 0
    %1926 = vmatpush2.bf16.msra.mxu0 %v1438
    %1927 = vmatprep.subr.bf16.mxu0 0
    %1928 = vmatpush2.bf16.msra.mxu0 %v1437
    %1929 = vmatprep.subr.bf16.mxu0 0
    %1930 = vmatpush2.bf16.msra.mxu0 %v1436
    %1931 = vmatprep.subr.bf16.mxu0 0
    %1932 = vmatpush2.bf16.msra.mxu0 %v1435
    %1933 = vmatprep.subr.bf16.mxu0 0
    %1934 = vmatpush2.bf16.msra.mxu0 %v1434
    %1935 = vmatprep.subr.bf16.mxu0 0
    %1936 = vmatpush2.bf16.msra.mxu0 %v1433
    %1937 = vmatprep.mubr.bf16.mxu0 %v190
    %1938 = vmatmul.mubr.bf16.gmra.mxu0 %v189
    %v1939 = vpop.f32.mrf.mxu0
    %v1940 = vadd.f32 %v1900, %v1939
    %v1941 = vpop.f32.mrf.mxu0
    %v1942 = vpop.f32.mrf.mxu0
    %v1943 = vpop.f32.mrf.mxu0
    %1944 = vdwg.mxu0
    %1945 = vmatprep.subr.bf16.mxu0 0
    %1946 = vmatpush1.bf16.msra.mxu0 %v1448
    %1947 = vmatprep.subr.bf16.mxu0 0
    %1948 = vmatpush1.bf16.msra.mxu0 %v1447
    %1949 = vmatprep.subr.bf16.mxu0 0
    %1950 = vmatpush1.bf16.msra.mxu0 %v1446
    %1951 = vmatprep.subr.bf16.mxu0 0
    %1952 = vmatpush1.bf16.msra.mxu0 %v1445
    %1953 = vmatprep.subr.bf16.mxu0 0
    %1954 = vmatpush1.bf16.msra.mxu0 %v1444
    %1955 = vmatprep.subr.bf16.mxu0 0
    %1956 = vmatpush1.bf16.msra.mxu0 %v1443
    %1957 = vmatprep.subr.bf16.mxu0 0
    %1958 = vmatpush1.bf16.msra.mxu0 %v1442
    %1959 = vmatprep.subr.bf16.mxu0 0
    %1960 = vmatpush1.bf16.msra.mxu0 %v1441
    %1961 = vmatprep.subr.bf16.mxu0 0
    %1962 = vmatpush2.bf16.msra.mxu0 %v1456
    %1963 = vmatprep.subr.bf16.mxu0 0
    %1964 = vmatpush2.bf16.msra.mxu0 %v1455
    %1965 = vmatprep.subr.bf16.mxu0 0
    %1966 = vmatpush2.bf16.msra.mxu0 %v1454
    %1967 = vmatprep.subr.bf16.mxu0 0
    %1968 = vmatpush2.bf16.msra.mxu0 %v1453
    %1969 = vmatprep.subr.bf16.mxu0 0
    %1970 = vmatpush2.bf16.msra.mxu0 %v1452
    %1971 = vmatprep.subr.bf16.mxu0 0
    %1972 = vmatpush2.bf16.msra.mxu0 %v1451
    %1973 = vmatprep.subr.bf16.mxu0 0
    %1974 = vmatpush2.bf16.msra.mxu0 %v1450
    %1975 = vmatprep.subr.bf16.mxu0 0
    %1976 = vmatpush2.bf16.msra.mxu0 %v1449
    %1977 = vmatprep.mubr.bf16.mxu0 %v192
    %1978 = vmatmul.mubr.bf16.gmra.mxu0 %v191
    %v1979 = vpop.f32.mrf.mxu0
    %v1980 = vadd.f32 %v1940, %v1979
    %v1981 = vpop.f32.mrf.mxu0
    %v1982 = vpop.f32.mrf.mxu0
    %v1983 = vpop.f32.mrf.mxu0
    %1984 = vdwg.mxu0
    %1985 = vmatprep.subr.bf16.mxu0 0
    %1986 = vmatpush1.bf16.msra.mxu0 %v1464
    %1987 = vmatprep.subr.bf16.mxu0 0
    %1988 = vmatpush1.bf16.msra.mxu0 %v1463
    %1989 = vmatprep.subr.bf16.mxu0 0
    %1990 = vmatpush1.bf16.msra.mxu0 %v1462
    %1991 = vmatprep.subr.bf16.mxu0 0
    %1992 = vmatpush1.bf16.msra.mxu0 %v1461
    %1993 = vmatprep.subr.bf16.mxu0 0
    %1994 = vmatpush1.bf16.msra.mxu0 %v1460
    %1995 = vmatprep.subr.bf16.mxu0 0
    %1996 = vmatpush1.bf16.msra.mxu0 %v1459
    %1997 = vmatprep.subr.bf16.mxu0 0
    %1998 = vmatpush1.bf16.msra.mxu0 %v1458
    %1999 = vmatprep.subr.bf16.mxu0 0
    %2000 = vmatpush1.bf16.msra.mxu0 %v1457
    %2001 = vmatprep.subr.bf16.mxu0 0
    %2002 = vmatpush2.bf16.msra.mxu0 %v1472
    %2003 = vmatprep.subr.bf16.mxu0 0
    %2004 = vmatpush2.bf16.msra.mxu0 %v1471
    %2005 = vmatprep.subr.bf16.mxu0 0
    %2006 = vmatpush2.bf16.msra.mxu0 %v1470
    %2007 = vmatprep.subr.bf16.mxu0 0
    %2008 = vmatpush2.bf16.msra.mxu0 %v1469
    %2009 = vmatprep.subr.bf16.mxu0 0
    %2010 = vmatpush2.bf16.msra.mxu0 %v1468
    %2011 = vmatprep.subr.bf16.mxu0 0
    %2012 = vmatpush2.bf16.msra.mxu0 %v1467
    %2013 = vmatprep.subr.bf16.mxu0 0
    %2014 = vmatpush2.bf16.msra.mxu0 %v1466
    %2015 = vmatprep.subr.bf16.mxu0 0
    %2016 = vmatpush2.bf16.msra.mxu0 %v1465
    %2017 = vmatprep.mubr.bf16.mxu0 %v194
    %2018 = vmatmul.mubr.bf16.gmra.mxu0 %v193
    %v2019 = vpop.f32.mrf.mxu0
    %v2020 = vadd.f32 %v1980, %v2019
    %v2021 = vpop.f32.mrf.mxu0
    %v2022 = vpop.f32.mrf.mxu0
    %v2023 = vpop.f32.mrf.mxu0
    %2024 = vdwg.mxu0
    %2025 = vmatprep.subr.bf16.mxu0 0
    %2026 = vmatpush1.bf16.msra.mxu0 %v1480
    %2027 = vmatprep.subr.bf16.mxu0 0
    %2028 = vmatpush1.bf16.msra.mxu0 %v1479
    %2029 = vmatprep.subr.bf16.mxu0 0
    %2030 = vmatpush1.bf16.msra.mxu0 %v1478
    %2031 = vmatprep.subr.bf16.mxu0 0
    %2032 = vmatpush1.bf16.msra.mxu0 %v1477
    %2033 = vmatprep.subr.bf16.mxu0 0
    %2034 = vmatpush1.bf16.msra.mxu0 %v1476
    %2035 = vmatprep.subr.bf16.mxu0 0
    %2036 = vmatpush1.bf16.msra.mxu0 %v1475
    %2037 = vmatprep.subr.bf16.mxu0 0
    %2038 = vmatpush1.bf16.msra.mxu0 %v1474
    %2039 = vmatprep.subr.bf16.mxu0 0
    %2040 = vmatpush1.bf16.msra.mxu0 %v1473
    %2041 = vmatprep.subr.bf16.mxu0 0
    %2042 = vmatpush2.bf16.msra.mxu0 %v1488
    %2043 = vmatprep.subr.bf16.mxu0 0
    %2044 = vmatpush2.bf16.msra.mxu0 %v1487
    %2045 = vmatprep.subr.bf16.mxu0 0
    %2046 = vmatpush2.bf16.msra.mxu0 %v1486
    %2047 = vmatprep.subr.bf16.mxu0 0
    %2048 = vmatpush2.bf16.msra.mxu0 %v1485
    %2049 = vmatprep.subr.bf16.mxu0 0
    %2050 = vmatpush2.bf16.msra.mxu0 %v1484
    %2051 = vmatprep.subr.bf16.mxu0 0
    %2052 = vmatpush2.bf16.msra.mxu0 %v1483
    %2053 = vmatprep.subr.bf16.mxu0 0
    %2054 = vmatpush2.bf16.msra.mxu0 %v1482
    %2055 = vmatprep.subr.bf16.mxu0 0
    %2056 = vmatpush2.bf16.msra.mxu0 %v1481
    %2057 = vmatprep.mubr.bf16.mxu0 %v196
    %2058 = vmatmul.mubr.bf16.gmra.mxu0 %v195
    %v2059 = vpop.f32.mrf.mxu0
    %v2060 = vadd.f32 %v2020, %v2059
    %v2061 = vpop.f32.mrf.mxu0
    %v2062 = vpop.f32.mrf.mxu0
    %v2063 = vpop.f32.mrf.mxu0
    %2064 = vdwg.mxu0
    %2065 = vmatprep.subr.bf16.mxu0 0
    %2066 = vmatpush1.bf16.msra.mxu0 %v1496
    %2067 = vmatprep.subr.bf16.mxu0 0
    %2068 = vmatpush1.bf16.msra.mxu0 %v1495
    %2069 = vmatprep.subr.bf16.mxu0 0
    %2070 = vmatpush1.bf16.msra.mxu0 %v1494
    %2071 = vmatprep.subr.bf16.mxu0 0
    %2072 = vmatpush1.bf16.msra.mxu0 %v1493
    %2073 = vmatprep.subr.bf16.mxu0 0
    %2074 = vmatpush1.bf16.msra.mxu0 %v1492
    %2075 = vmatprep.subr.bf16.mxu0 0
    %2076 = vmatpush1.bf16.msra.mxu0 %v1491
    %2077 = vmatprep.subr.bf16.mxu0 0
    %2078 = vmatpush1.bf16.msra.mxu0 %v1490
    %2079 = vmatprep.subr.bf16.mxu0 0
    %2080 = vmatpush1.bf16.msra.mxu0 %v1489
    %2081 = vmatprep.subr.bf16.mxu0 0
    %2082 = vmatpush2.bf16.msra.mxu0 %v1504
    %2083 = vmatprep.subr.bf16.mxu0 0
    %2084 = vmatpush2.bf16.msra.mxu0 %v1503
    %2085 = vmatprep.subr.bf16.mxu0 0
    %2086 = vmatpush2.bf16.msra.mxu0 %v1502
    %2087 = vmatprep.subr.bf16.mxu0 0
    %2088 = vmatpush2.bf16.msra.mxu0 %v1501
    %2089 = vmatprep.subr.bf16.mxu0 0
    %2090 = vmatpush2.bf16.msra.mxu0 %v1500
    %2091 = vmatprep.subr.bf16.mxu0 0
    %2092 = vmatpush2.bf16.msra.mxu0 %v1499
    %2093 = vmatprep.subr.bf16.mxu0 0
    %2094 = vmatpush2.bf16.msra.mxu0 %v1498
    %2095 = vmatprep.subr.bf16.mxu0 0
    %2096 = vmatpush2.bf16.msra.mxu0 %v1497
    %2097 = vmatprep.mubr.bf16.mxu0 %v198
    %2098 = vmatmul.mubr.bf16.gmra.mxu0 %v197
    %v2099 = vpop.f32.mrf.mxu0
    %v2100 = vadd.f32 %v2060, %v2099
    %v2101 = vpop.f32.mrf.mxu0
    %v2102 = vpop.f32.mrf.mxu0
    %v2103 = vpop.f32.mrf.mxu0
    %2104 = vdwg.mxu0
    %2105 = vmatprep.subr.bf16.mxu0 0
    %2106 = vmatpush1.bf16.msra.mxu0 %v1512
    %2107 = vmatprep.subr.bf16.mxu0 0
    %2108 = vmatpush1.bf16.msra.mxu0 %v1511
    %2109 = vmatprep.subr.bf16.mxu0 0
    %2110 = vmatpush1.bf16.msra.mxu0 %v1510
    %2111 = vmatprep.subr.bf16.mxu0 0
    %2112 = vmatpush1.bf16.msra.mxu0 %v1509
    %2113 = vmatprep.subr.bf16.mxu0 0
    %2114 = vmatpush1.bf16.msra.mxu0 %v1508
    %2115 = vmatprep.subr.bf16.mxu0 0
    %2116 = vmatpush1.bf16.msra.mxu0 %v1507
    %2117 = vmatprep.subr.bf16.mxu0 0
    %2118 = vmatpush1.bf16.msra.mxu0 %v1506
    %2119 = vmatprep.subr.bf16.mxu0 0
    %2120 = vmatpush1.bf16.msra.mxu0 %v1505
    %2121 = vmatprep.subr.bf16.mxu0 0
    %2122 = vmatpush2.bf16.msra.mxu0 %v1520
    %2123 = vmatprep.subr.bf16.mxu0 0
    %2124 = vmatpush2.bf16.msra.mxu0 %v1519
    %2125 = vmatprep.subr.bf16.mxu0 0
    %2126 = vmatpush2.bf16.msra.mxu0 %v1518
    %2127 = vmatprep.subr.bf16.mxu0 0
    %2128 = vmatpush2.bf16.msra.mxu0 %v1517
    %2129 = vmatprep.subr.bf16.mxu0 0
    %2130 = vmatpush2.bf16.msra.mxu0 %v1516
    %2131 = vmatprep.subr.bf16.mxu0 0
    %2132 = vmatpush2.bf16.msra.mxu0 %v1515
    %2133 = vmatprep.subr.bf16.mxu0 0
    %2134 = vmatpush2.bf16.msra.mxu0 %v1514
    %2135 = vmatprep.subr.bf16.mxu0 0
    %2136 = vmatpush2.bf16.msra.mxu0 %v1513
    %2137 = vmatprep.mubr.bf16.mxu0 %v200
    %2138 = vmatmul.mubr.bf16.gmra.mxu0 %v199
    %v2139 = vpop.f32.mrf.mxu0
    %v2140 = vadd.f32 %v2100, %v2139
    %v2141 = vpop.f32.mrf.mxu0
    %v2142 = vpop.f32.mrf.mxu0
    %v2143 = vpop.f32.mrf.mxu0
    %2144 = vdwg.mxu0
    %2145 = vmatprep.subr.bf16.mxu0 0
    %2146 = vmatpush1.bf16.msra.mxu0 %v1528
    %2147 = vmatprep.subr.bf16.mxu0 0
    %2148 = vmatpush1.bf16.msra.mxu0 %v1527
    %2149 = vmatprep.subr.bf16.mxu0 0
    %2150 = vmatpush1.bf16.msra.mxu0 %v1526
    %2151 = vmatprep.subr.bf16.mxu0 0
    %2152 = vmatpush1.bf16.msra.mxu0 %v1525
    %2153 = vmatprep.subr.bf16.mxu0 0
    %2154 = vmatpush1.bf16.msra.mxu0 %v1524
    %2155 = vmatprep.subr.bf16.mxu0 0
    %2156 = vmatpush1.bf16.msra.mxu0 %v1523
    %2157 = vmatprep.subr.bf16.mxu0 0
    %2158 = vmatpush1.bf16.msra.mxu0 %v1522
    %2159 = vmatprep.subr.bf16.mxu0 0
    %2160 = vmatpush1.bf16.msra.mxu0 %v1521
    %2161 = vmatprep.subr.bf16.mxu0 0
    %2162 = vmatpush2.bf16.msra.mxu0 %v1536
    %2163 = vmatprep.subr.bf16.mxu0 0
    %2164 = vmatpush2.bf16.msra.mxu0 %v1535
    %2165 = vmatprep.subr.bf16.mxu0 0
    %2166 = vmatpush2.bf16.msra.mxu0 %v1534
    %2167 = vmatprep.subr.bf16.mxu0 0
    %2168 = vmatpush2.bf16.msra.mxu0 %v1533
    %2169 = vmatprep.subr.bf16.mxu0 0
    %2170 = vmatpush2.bf16.msra.mxu0 %v1532
    %2171 = vmatprep.subr.bf16.mxu0 0
    %2172 = vmatpush2.bf16.msra.mxu0 %v1531
    %2173 = vmatprep.subr.bf16.mxu0 0
    %2174 = vmatpush2.bf16.msra.mxu0 %v1530
    %2175 = vmatprep.subr.bf16.mxu0 0
    %2176 = vmatpush2.bf16.msra.mxu0 %v1529
    %2177 = vmatprep.mubr.bf16.mxu0 %v202
    %2178 = vmatmul.mubr.bf16.gmra.mxu0 %v201
    %v2179 = vpop.f32.mrf.mxu0
    %v2180 = vadd.f32 %v2140, %v2179
    %v2181 = vpop.f32.mrf.mxu0
    %v2182 = vpop.f32.mrf.mxu0
    %v2183 = vpop.f32.mrf.mxu0
    %2184 = vdwg.mxu0
    %2185 = vmatprep.subr.bf16.mxu0 0
    %2186 = vmatpush1.bf16.msra.mxu0 %v1544
    %2187 = vmatprep.subr.bf16.mxu0 0
    %2188 = vmatpush1.bf16.msra.mxu0 %v1543
    %2189 = vmatprep.subr.bf16.mxu0 0
    %2190 = vmatpush1.bf16.msra.mxu0 %v1542
    %2191 = vmatprep.subr.bf16.mxu0 0
    %2192 = vmatpush1.bf16.msra.mxu0 %v1541
    %2193 = vmatprep.subr.bf16.mxu0 0
    %2194 = vmatpush1.bf16.msra.mxu0 %v1540
    %2195 = vmatprep.subr.bf16.mxu0 0
    %2196 = vmatpush1.bf16.msra.mxu0 %v1539
    %2197 = vmatprep.subr.bf16.mxu0 0
    %2198 = vmatpush1.bf16.msra.mxu0 %v1538
    %2199 = vmatprep.subr.bf16.mxu0 0
    %2200 = vmatpush1.bf16.msra.mxu0 %v1537
    %2201 = vmatprep.subr.bf16.mxu0 0
    %2202 = vmatpush2.bf16.msra.mxu0 %v1552
    %2203 = vmatprep.subr.bf16.mxu0 0
    %2204 = vmatpush2.bf16.msra.mxu0 %v1551
    %2205 = vmatprep.subr.bf16.mxu0 0
    %2206 = vmatpush2.bf16.msra.mxu0 %v1550
    %2207 = vmatprep.subr.bf16.mxu0 0
    %2208 = vmatpush2.bf16.msra.mxu0 %v1549
    %2209 = vmatprep.subr.bf16.mxu0 0
    %2210 = vmatpush2.bf16.msra.mxu0 %v1548
    %2211 = vmatprep.subr.bf16.mxu0 0
    %2212 = vmatpush2.bf16.msra.mxu0 %v1547
    %2213 = vmatprep.subr.bf16.mxu0 0
    %2214 = vmatpush2.bf16.msra.mxu0 %v1546
    %2215 = vmatprep.subr.bf16.mxu0 0
    %2216 = vmatpush2.bf16.msra.mxu0 %v1545
    %2217 = vmatprep.mubr.bf16.mxu0 %v204
    %2218 = vmatmul.mubr.bf16.gmra.mxu0 %v203
    %v2219 = vpop.f32.mrf.mxu0
    %v2220 = vadd.f32 %v2180, %v2219
    %v2221 = vpop.f32.mrf.mxu0
    %v2222 = vpop.f32.mrf.mxu0
    %v2223 = vpop.f32.mrf.mxu0
    %2224 = vdwg.mxu0
    %vm2225 = vcmask 523264
    %v2227 = vsel %vm2225, %v2220, 0
    %2229 = vmatprep.subr.mxu0 0.0
    %2230 = vmatpush1.msra.mxu0 0.0
    %2231 = vmatprep.subr.mxu0 0.0
    %2232 = vmatpush1.msra.mxu0 0.0
    %2233 = vmatprep.subr.mxu0 0.0
    %2234 = vmatpush1.msra.mxu0 0.0
    %2235 = vmatprep.subr.mxu0 0.0
    %2236 = vmatpush1.msra.mxu0 0.0
    %2237 = vmatprep.subr.mxu0 0.0
    %2238 = vmatpush1.msra.mxu0 0.0
    %2239 = vmatprep.subr.mxu0 0.0
    %2240 = vmatpush1.msra.mxu0 0.0
    %2241 = vmatprep.subr.mxu0 0.0
    %2242 = vmatpush1.msra.mxu0 0.0
    %2243 = vmatprep.subr.mxu0 0.0
    %2244 = vmatpush1.msra.mxu0 0.0
    %2245 = vmatprep.subr.mxu0 0.0
    %2246 = vmatpush1.msra.mxu0 %v39
    %2247 = vmatprep.subr.mxu0 0.0
    %2248 = vmatpush1.msra.mxu0 %v38
    %2249 = vmatprep.subr.mxu0 0.0
    %2250 = vmatpush1.msra.mxu0 %v37
    %2251 = vmatprep.subr.mxu0 0.0
    %2252 = vmatpush1.msra.mxu0 %v36
    %2253 = vmatprep.subr.mxu0 0.0
    %2254 = vmatpush1.msra.mxu0 %v35
    %2255 = vmatprep.subr.mxu0 0.0
    %2256 = vmatpush1.msra.mxu0 %v34
    %2257 = vmatprep.subr.mxu0 0.0
    %2258 = vmatpush1.msra.mxu0 %v33
    %2259 = vmatprep.subr.mxu0 0.0
    %2260 = vmatpush1.msra.mxu0 %v32
    %2261 = vmatprep.subr.mxu0 0.0
    %2262 = vmatpush2.msra.mxu0 0.0
    %2263 = vmatprep.subr.mxu0 0.0
    %2264 = vmatpush2.msra.mxu0 0.0
    %2265 = vmatprep.subr.mxu0 0.0
    %2266 = vmatpush2.msra.mxu0 0.0
    %2267 = vmatprep.subr.mxu0 0.0
    %2268 = vmatpush2.msra.mxu0 0.0
    %2269 = vmatprep.subr.mxu0 0.0
    %2270 = vmatpush2.msra.mxu0 0.0
    %2271 = vmatprep.subr.mxu0 0.0
    %2272 = vmatpush2.msra.mxu0 0.0
    %2273 = vmatprep.subr.mxu0 0.0
    %2274 = vmatpush2.msra.mxu0 0.0
    %2275 = vmatprep.subr.mxu0 0.0
    %2276 = vmatpush2.msra.mxu0 0.0
    %2277 = vmatprep.subr.mxu0 0.0
    %2278 = vmatpush2.msra.mxu0 0.0
    %2279 = vmatprep.subr.mxu0 0.0
    %2280 = vmatpush2.msra.mxu0 0.0
    %2281 = vmatprep.subr.mxu0 0.0
    %2282 = vmatpush2.msra.mxu0 0.0
    %2283 = vmatprep.subr.mxu0 0.0
    %2284 = vmatpush2.msra.mxu0 0.0
    %2285 = vmatprep.subr.mxu0 0.0
    %2286 = vmatpush2.msra.mxu0 0.0
    %2287 = vmatprep.subr.mxu0 0.0
    %2288 = vmatpush2.msra.mxu0 0.0
    %2289 = vmatprep.subr.mxu0 0.0
    %2290 = vmatpush2.msra.mxu0 0.0
    %2291 = vmatprep.subr.mxu0 0.0
    %2292 = vmatpush2.msra.mxu0 0.0
    %2293 = vmatprep.mubr.f32.mxu0 0.0
    %2294 = vmatmul.mubr.f32.gmra.mxu0 %v2227
    %v2295 = vpop.f32.mrf.mxu0
    %v2296 = vadd.f32 0.0, %v2295
    %v2297 = vpop.f32.mrf.mxu0
    %2298 = vdwg.mxu0
    %v2299 = vmul.f32 %v2220, %v2220
    %v2301 = vsel %vm2225, %v2299, 0
    %2303 = vmatprep.subr.mxu0 0.0
    %2304 = vmatpush1.msra.mxu0 0.0
    %2305 = vmatprep.subr.mxu0 0.0
    %2306 = vmatpush1.msra.mxu0 0.0
    %2307 = vmatprep.subr.mxu0 0.0
    %2308 = vmatpush1.msra.mxu0 0.0
    %2309 = vmatprep.subr.mxu0 0.0
    %2310 = vmatpush1.msra.mxu0 0.0
    %2311 = vmatprep.subr.mxu0 0.0
    %2312 = vmatpush1.msra.mxu0 0.0
    %2313 = vmatprep.subr.mxu0 0.0
    %2314 = vmatpush1.msra.mxu0 0.0
    %2315 = vmatprep.subr.mxu0 0.0
    %2316 = vmatpush1.msra.mxu0 0.0
    %2317 = vmatprep.subr.mxu0 0.0
    %2318 = vmatpush1.msra.mxu0 0.0
    %2319 = vmatprep.subr.mxu0 0.0
    %2320 = vmatpush1.msra.mxu0 %v39
    %2321 = vmatprep.subr.mxu0 0.0
    %2322 = vmatpush1.msra.mxu0 %v38
    %2323 = vmatprep.subr.mxu0 0.0
    %2324 = vmatpush1.msra.mxu0 %v37
    %2325 = vmatprep.subr.mxu0 0.0
    %2326 = vmatpush1.msra.mxu0 %v36
    %2327 = vmatprep.subr.mxu0 0.0
    %2328 = vmatpush1.msra.mxu0 %v35
    %2329 = vmatprep.subr.mxu0 0.0
    %2330 = vmatpush1.msra.mxu0 %v34
    %2331 = vmatprep.subr.mxu0 0.0
    %2332 = vmatpush1.msra.mxu0 %v33
    %2333 = vmatprep.subr.mxu0 0.0
    %2334 = vmatpush1.msra.mxu0 %v32
    %2335 = vmatprep.subr.mxu0 0.0
    %2336 = vmatpush2.msra.mxu0 0.0
    %2337 = vmatprep.subr.mxu0 0.0
    %2338 = vmatpush2.msra.mxu0 0.0
    %2339 = vmatprep.subr.mxu0 0.0
    %2340 = vmatpush2.msra.mxu0 0.0
    %2341 = vmatprep.subr.mxu0 0.0
    %2342 = vmatpush2.msra.mxu0 0.0
    %2343 = vmatprep.subr.mxu0 0.0
    %2344 = vmatpush2.msra.mxu0 0.0
    %2345 = vmatprep.subr.mxu0 0.0
    %2346 = vmatpush2.msra.mxu0 0.0
    %2347 = vmatprep.subr.mxu0 0.0
    %2348 = vmatpush2.msra.mxu0 0.0
    %2349 = vmatprep.subr.mxu0 0.0
    %2350 = vmatpush2.msra.mxu0 0.0
    %2351 = vmatprep.subr.mxu0 0.0
    %2352 = vmatpush2.msra.mxu0 0.0
    %2353 = vmatprep.subr.mxu0 0.0
    %2354 = vmatpush2.msra.mxu0 0.0
    %2355 = vmatprep.subr.mxu0 0.0
    %2356 = vmatpush2.msra.mxu0 0.0
    %2357 = vmatprep.subr.mxu0 0.0
    %2358 = vmatpush2.msra.mxu0 0.0
    %2359 = vmatprep.subr.mxu0 0.0
    %2360 = vmatpush2.msra.mxu0 0.0
    %2361 = vmatprep.subr.mxu0 0.0
    %2362 = vmatpush2.msra.mxu0 0.0
    %2363 = vmatprep.subr.mxu0 0.0
    %2364 = vmatpush2.msra.mxu0 0.0
    %2365 = vmatprep.subr.mxu0 0.0
    %2366 = vmatpush2.msra.mxu0 0.0
    %2367 = vmatprep.mubr.f32.mxu0 0.0
    %2368 = vmatmul.mubr.f32.gmra.mxu0 %v2301
    %v2369 = vpop.f32.mrf.mxu0
    %v2370 = vadd.f32 0.0, %v2369
    %v2371 = vpop.f32.mrf.mxu0
    %2372 = vdwg.mxu0
    %v2373 = vmul.f32 %v2296, %v2296
    %v2374 = vsub.f32 %v2370, %v2373
    %v2375 = vsub.f32 %v2220, %v2296
    %v2376 = vadd.f32 %v2374, 1e-06
    %v2377 = vrsqrt.pop %v2376
    %v2378 = vmul.f32 %v2375, %v2377
    %v2379 = vlaneseq
    %v2380 = vshrl.u32 %v2379, 7
    %v2381 = vsub.s32 1, %v2380
    %v2382 = vrot.slane %v31, %v2381
    %v2383 = vmul.f32 %v2378, %v2382
    %v2384 = vlaneseq
    %v2385 = vshrl.u32 %v2384, 7
    %v2386 = vsub.s32 2, %v2385
    %v2387 = vrot.slane %v31, %v2386
    %v2388 = vadd.f32 %v2383, %v2387
    %v2389 = vmul.f32 %v2388, 0.5
    %v2390 = vmul.f32 %v2388, 0.044715
    %v2391 = vmul.f32 %v2390, %v2388
    %v2392 = vmul.f32 %v2391, %v2388
    %v2393 = vadd.f32 %v2388, %v2392
    %v2394 = vmul.f32 %v2393, 0.7978846
    %v2395 = vtanh.pop %v2394
    %v2396 = vadd.f32 %v2395, 1.0
    %v2397 = vmul.f32 %v2389, %v2396
    %v2398 = vld [vmem:[%s2] sm:$0xff]
    %v2399 = vld [vmem:[%s2 + $0x8] sm:$0xff]
    %v2400 = vld [vmem:[%s2 + $0x10] sm:$0xff]
    %v2401 = vld [vmem:[%s2 + $0x18] sm:$0xff]
    %v2402 = vld [vmem:[%s2 + $0x20] sm:$0xff]
    %v2403 = vld [vmem:[%s2 + $0x28] sm:$0xff]
    %v2404 = vld [vmem:[%s2 + $0x30] sm:$0xff]
    %v2405 = vld [vmem:[%s2 + $0x38] sm:$0xff]
    %v2406 = vlaneseq
    %v2407 = vshrl.u32 %v2406, 7
    %v2408 = vsub.s32 3, %v2407
    %v2409 = vrot.slane %v31, %v2408
    %v2411 = vsel %vm2225, %v2397, 0
    %2413 = vmatprep.subr.mxu0 0.0
    %2414 = vmatpush1.msra.mxu0 0.0
    %2415 = vmatprep.subr.mxu0 0.0
    %2416 = vmatpush1.msra.mxu0 0.0
    %2417 = vmatprep.subr.mxu0 0.0
    %2418 = vmatpush1.msra.mxu0 0.0
    %2419 = vmatprep.subr.mxu0 0.0
    %2420 = vmatpush1.msra.mxu0 0.0
    %2421 = vmatprep.subr.mxu0 0.0
    %2422 = vmatpush1.msra.mxu0 0.0
    %2423 = vmatprep.subr.mxu0 0.0
    %2424 = vmatpush1.msra.mxu0 0.0
    %2425 = vmatprep.subr.mxu0 0.0
    %2426 = vmatpush1.msra.mxu0 0.0
    %2427 = vmatprep.subr.mxu0 0.0
    %2428 = vmatpush1.msra.mxu0 0.0
    %2429 = vmatprep.subr.mxu0 0.0
    %2430 = vmatpush1.msra.mxu0 %v2405
    %2431 = vmatprep.subr.mxu0 0.0
    %2432 = vmatpush1.msra.mxu0 %v2404
    %2433 = vmatprep.subr.mxu0 0.0
    %2434 = vmatpush1.msra.mxu0 %v2403
    %2435 = vmatprep.subr.mxu0 0.0
    %2436 = vmatpush1.msra.mxu0 %v2402
    %2437 = vmatprep.subr.mxu0 0.0
    %2438 = vmatpush1.msra.mxu0 %v2401
    %2439 = vmatprep.subr.mxu0 0.0
    %2440 = vmatpush1.msra.mxu0 %v2400
    %2441 = vmatprep.subr.mxu0 0.0
    %2442 = vmatpush1.msra.mxu0 %v2399
    %2443 = vmatprep.subr.mxu0 0.0
    %2444 = vmatpush1.msra.mxu0 %v2398
    %2445 = vmatprep.subr.mxu0 0.0
    %2446 = vmatpush2.msra.mxu0 0.0
    %2447 = vmatprep.subr.mxu0 0.0
    %2448 = vmatpush2.msra.mxu0 0.0
    %2449 = vmatprep.subr.mxu0 0.0
    %2450 = vmatpush2.msra.mxu0 0.0
    %2451 = vmatprep.subr.mxu0 0.0
    %2452 = vmatpush2.msra.mxu0 0.0
    %2453 = vmatprep.subr.mxu0 0.0
    %2454 = vmatpush2.msra.mxu0 0.0
    %2455 = vmatprep.subr.mxu0 0.0
    %2456 = vmatpush2.msra.mxu0 0.0
    %2457 = vmatprep.subr.mxu0 0.0
    %2458 = vmatpush2.msra.mxu0 0.0
    %2459 = vmatprep.subr.mxu0 0.0
    %2460 = vmatpush2.msra.mxu0 0.0
    %2461 = vmatprep.subr.mxu0 0.0
    %2462 = vmatpush2.msra.mxu0 0.0
    %2463 = vmatprep.subr.mxu0 0.0
    %2464 = vmatpush2.msra.mxu0 0.0
    %2465 = vmatprep.subr.mxu0 0.0
    %2466 = vmatpush2.msra.mxu0 0.0
    %2467 = vmatprep.subr.mxu0 0.0
    %2468 = vmatpush2.msra.mxu0 0.0
    %2469 = vmatprep.subr.mxu0 0.0
    %2470 = vmatpush2.msra.mxu0 0.0
    %2471 = vmatprep.subr.mxu0 0.0
    %2472 = vmatpush2.msra.mxu0 0.0
    %2473 = vmatprep.subr.mxu0 0.0
    %2474 = vmatpush2.msra.mxu0 0.0
    %2475 = vmatprep.subr.mxu0 0.0
    %2476 = vmatpush2.msra.mxu0 0.0
    %2477 = vmatprep.mubr.f32.mxu0 0.0
    %2478 = vmatmul.mubr.f32.gmra.mxu0 %v2411
    %v2479 = vpop.f32.mrf.mxu0
    %v2480 = vadd.f32 %v2409, %v2479
    %v2481 = vpop.f32.mrf.mxu0
    %2482 = vdwg.mxu0
    %v2484 = vsel %vm2225, %v2480, 0
    %2486 = vmatprep.subr.mxu0 0.0
    %2487 = vmatpush1.msra.mxu0 0.0
    %2488 = vmatprep.subr.mxu0 0.0
    %2489 = vmatpush1.msra.mxu0 0.0
    %2490 = vmatprep.subr.mxu0 0.0
    %2491 = vmatpush1.msra.mxu0 0.0
    %2492 = vmatprep.subr.mxu0 0.0
    %2493 = vmatpush1.msra.mxu0 0.0
    %2494 = vmatprep.subr.mxu0 0.0
    %2495 = vmatpush1.msra.mxu0 0.0
    %2496 = vmatprep.subr.mxu0 0.0
    %2497 = vmatpush1.msra.mxu0 0.0
    %2498 = vmatprep.subr.mxu0 0.0
    %2499 = vmatpush1.msra.mxu0 0.0
    %2500 = vmatprep.subr.mxu0 0.0
    %2501 = vmatpush1.msra.mxu0 0.0
    %2502 = vmatprep.subr.mxu0 0.0
    %2503 = vmatpush1.msra.mxu0 %v48
    %2504 = vmatprep.subr.mxu0 0.0
    %2505 = vmatpush1.msra.mxu0 %v47
    %2506 = vmatprep.subr.mxu0 0.0
    %2507 = vmatpush1.msra.mxu0 %v46
    %2508 = vmatprep.subr.mxu0 0.0
    %2509 = vmatpush1.msra.mxu0 %v45
    %2510 = vmatprep.subr.mxu0 0.0
    %2511 = vmatpush1.msra.mxu0 %v44
    %2512 = vmatprep.subr.mxu0 0.0
    %2513 = vmatpush1.msra.mxu0 %v43
    %2514 = vmatprep.subr.mxu0 0.0
    %2515 = vmatpush1.msra.mxu0 %v42
    %2516 = vmatprep.subr.mxu0 0.0
    %2517 = vmatpush1.msra.mxu0 %v41
    %2518 = vmatprep.subr.mxu0 0.0
    %2519 = vmatpush2.msra.mxu0 0.0
    %2520 = vmatprep.subr.mxu0 0.0
    %2521 = vmatpush2.msra.mxu0 0.0
    %2522 = vmatprep.subr.mxu0 0.0
    %2523 = vmatpush2.msra.mxu0 0.0
    %2524 = vmatprep.subr.mxu0 0.0
    %2525 = vmatpush2.msra.mxu0 0.0
    %2526 = vmatprep.subr.mxu0 0.0
    %2527 = vmatpush2.msra.mxu0 0.0
    %2528 = vmatprep.subr.mxu0 0.0
    %2529 = vmatpush2.msra.mxu0 0.0
    %2530 = vmatprep.subr.mxu0 0.0
    %2531 = vmatpush2.msra.mxu0 0.0
    %2532 = vmatprep.subr.mxu0 0.0
    %2533 = vmatpush2.msra.mxu0 0.0
    %2534 = vmatprep.subr.mxu0 0.0
    %2535 = vmatpush2.msra.mxu0 0.0
    %2536 = vmatprep.subr.mxu0 0.0
    %2537 = vmatpush2.msra.mxu0 0.0
    %2538 = vmatprep.subr.mxu0 0.0
    %2539 = vmatpush2.msra.mxu0 0.0
    %2540 = vmatprep.subr.mxu0 0.0
    %2541 = vmatpush2.msra.mxu0 0.0
    %2542 = vmatprep.subr.mxu0 0.0
    %2543 = vmatpush2.msra.mxu0 0.0
    %2544 = vmatprep.subr.mxu0 0.0
    %2545 = vmatpush2.msra.mxu0 0.0
    %2546 = vmatprep.subr.mxu0 0.0
    %2547 = vmatpush2.msra.mxu0 0.0
    %2548 = vmatprep.subr.mxu0 0.0
    %2549 = vmatpush2.msra.mxu0 0.0
    %2550 = vmatprep.mubr.f32.mxu0 0.0
    %2551 = vmatmul.mubr.f32.gmra.mxu0 %v2484
    %v2552 = vpop.f32.mrf.mxu0
    %v2553 = vadd.f32 0.0, %v2552
    %v2554 = vpop.f32.mrf.mxu0
    %2555 = vdwg.mxu0
    %v2556 = vmul.f32 %v2480, %v2480
    %v2558 = vsel %vm2225, %v2556, 0
    %2560 = vmatprep.subr.mxu0 0.0
    %2561 = vmatpush1.msra.mxu0 0.0
    %2562 = vmatprep.subr.mxu0 0.0
    %2563 = vmatpush1.msra.mxu0 0.0
    %2564 = vmatprep.subr.mxu0 0.0
    %2565 = vmatpush1.msra.mxu0 0.0
    %2566 = vmatprep.subr.mxu0 0.0
    %2567 = vmatpush1.msra.mxu0 0.0
    %2568 = vmatprep.subr.mxu0 0.0
    %2569 = vmatpush1.msra.mxu0 0.0
    %2570 = vmatprep.subr.mxu0 0.0
    %2571 = vmatpush1.msra.mxu0 0.0
    %2572 = vmatprep.subr.mxu0 0.0
    %2573 = vmatpush1.msra.mxu0 0.0
    %2574 = vmatprep.subr.mxu0 0.0
    %2575 = vmatpush1.msra.mxu0 0.0
    %2576 = vmatprep.subr.mxu0 0.0
    %2577 = vmatpush1.msra.mxu0 %v48
    %2578 = vmatprep.subr.mxu0 0.0
    %2579 = vmatpush1.msra.mxu0 %v47
    %2580 = vmatprep.subr.mxu0 0.0
    %2581 = vmatpush1.msra.mxu0 %v46
    %2582 = vmatprep.subr.mxu0 0.0
    %2583 = vmatpush1.msra.mxu0 %v45
    %2584 = vmatprep.subr.mxu0 0.0
    %2585 = vmatpush1.msra.mxu0 %v44
    %2586 = vmatprep.subr.mxu0 0.0
    %2587 = vmatpush1.msra.mxu0 %v43
    %2588 = vmatprep.subr.mxu0 0.0
    %2589 = vmatpush1.msra.mxu0 %v42
    %2590 = vmatprep.subr.mxu0 0.0
    %2591 = vmatpush1.msra.mxu0 %v41
    %2592 = vmatprep.subr.mxu0 0.0
    %2593 = vmatpush2.msra.mxu0 0.0
    %2594 = vmatprep.subr.mxu0 0.0
    %2595 = vmatpush2.msra.mxu0 0.0
    %2596 = vmatprep.subr.mxu0 0.0
    %2597 = vmatpush2.msra.mxu0 0.0
    %2598 = vmatprep.subr.mxu0 0.0
    %2599 = vmatpush2.msra.mxu0 0.0
    %2600 = vmatprep.subr.mxu0 0.0
    %2601 = vmatpush2.msra.mxu0 0.0
    %2602 = vmatprep.subr.mxu0 0.0
    %2603 = vmatpush2.msra.mxu0 0.0
    %2604 = vmatprep.subr.mxu0 0.0
    %2605 = vmatpush2.msra.mxu0 0.0
    %2606 = vmatprep.subr.mxu0 0.0
    %2607 = vmatpush2.msra.mxu0 0.0
    %2608 = vmatprep.subr.mxu0 0.0
    %2609 = vmatpush2.msra.mxu0 0.0
    %2610 = vmatprep.subr.mxu0 0.0
    %2611 = vmatpush2.msra.mxu0 0.0
    %2612 = vmatprep.subr.mxu0 0.0
    %2613 = vmatpush2.msra.mxu0 0.0
    %2614 = vmatprep.subr.mxu0 0.0
    %2615 = vmatpush2.msra.mxu0 0.0
    %2616 = vmatprep.subr.mxu0 0.0
    %2617 = vmatpush2.msra.mxu0 0.0
    %2618 = vmatprep.subr.mxu0 0.0
    %2619 = vmatpush2.msra.mxu0 0.0
    %2620 = vmatprep.subr.mxu0 0.0
    %2621 = vmatpush2.msra.mxu0 0.0
    %2622 = vmatprep.subr.mxu0 0.0
    %2623 = vmatpush2.msra.mxu0 0.0
    %2624 = vmatprep.mubr.f32.mxu0 0.0
    %2625 = vmatmul.mubr.f32.gmra.mxu0 %v2558
    %v2626 = vpop.f32.mrf.mxu0
    %v2627 = vadd.f32 0.0, %v2626
    %v2628 = vpop.f32.mrf.mxu0
    %2629 = vdwg.mxu0
    %v2630 = vmul.f32 %v2553, %v2553
    %v2631 = vsub.f32 %v2627, %v2630
    %v2632 = vsub.f32 %v2480, %v2553
    %v2633 = vadd.f32 %v2631, 1e-06
    %v2634 = vrsqrt.pop %v2633
    %v2635 = vmul.f32 %v2632, %v2634
    %v2636 = vlaneseq
    %v2637 = vshrl.u32 %v2636, 7
    %v2638 = vsub.s32 4, %v2637
    %v2639 = vrot.slane %v31, %v2638
    %v2640 = vmul.f32 %v2635, %v2639
    %v2641 = vlaneseq
    %v2642 = vshrl.u32 %v2641, 7
    %v2643 = vsub.s32 5, %v2642
    %v2644 = vrot.slane %v31, %v2643
    %v2645 = vadd.f32 %v2640, %v2644
    %v2646 = vmul.f32 %v2645, 0.5
    %v2647 = vmul.f32 %v2645, 0.044715
    %v2648 = vmul.f32 %v2647, %v2645
    %v2649 = vmul.f32 %v2648, %v2645
    %v2650 = vadd.f32 %v2645, %v2649
    %v2651 = vmul.f32 %v2650, 0.7978846
    %v2652 = vtanh.pop %v2651
    %v2653 = vadd.f32 %v2652, 1.0
    %v2654 = vmul.f32 %v2646, %v2653
    %v2655 = vld [vmem:[%s3] sm:$0xff]
    %v2656 = vld [vmem:[%s3 + $0x8] sm:$0xff]
    %v2657 = vld [vmem:[%s3 + $0x10] sm:$0xff]
    %v2658 = vld [vmem:[%s3 + $0x18] sm:$0xff]
    %v2659 = vld [vmem:[%s3 + $0x20] sm:$0xff]
    %v2660 = vld [vmem:[%s3 + $0x28] sm:$0xff]
    %v2661 = vld [vmem:[%s3 + $0x30] sm:$0xff]
    %v2662 = vld [vmem:[%s3 + $0x38] sm:$0xff]
    %v2663 = vlaneseq
    %v2664 = vshrl.u32 %v2663, 7
    %v2665 = vsub.s32 6, %v2664
    %v2666 = vrot.slane %v31, %v2665
    %v2668 = vsel %vm2225, %v2654, 0
    %2670 = vmatprep.subr.mxu0 0.0
    %2671 = vmatpush1.msra.mxu0 0.0
    %2672 = vmatprep.subr.mxu0 0.0
    %2673 = vmatpush1.msra.mxu0 0.0
    %2674 = vmatprep.subr.mxu0 0.0
    %2675 = vmatpush1.msra.mxu0 0.0
    %2676 = vmatprep.subr.mxu0 0.0
    %2677 = vmatpush1.msra.mxu0 0.0
    %2678 = vmatprep.subr.mxu0 0.0
    %2679 = vmatpush1.msra.mxu0 0.0
    %2680 = vmatprep.subr.mxu0 0.0
    %2681 = vmatpush1.msra.mxu0 0.0
    %2682 = vmatprep.subr.mxu0 0.0
    %2683 = vmatpush1.msra.mxu0 0.0
    %2684 = vmatprep.subr.mxu0 0.0
    %2685 = vmatpush1.msra.mxu0 0.0
    %2686 = vmatprep.subr.mxu0 0.0
    %2687 = vmatpush1.msra.mxu0 %v2662
    %2688 = vmatprep.subr.mxu0 0.0
    %2689 = vmatpush1.msra.mxu0 %v2661
    %2690 = vmatprep.subr.mxu0 0.0
    %2691 = vmatpush1.msra.mxu0 %v2660
    %2692 = vmatprep.subr.mxu0 0.0
    %2693 = vmatpush1.msra.mxu0 %v2659
    %2694 = vmatprep.subr.mxu0 0.0
    %2695 = vmatpush1.msra.mxu0 %v2658
    %2696 = vmatprep.subr.mxu0 0.0
    %2697 = vmatpush1.msra.mxu0 %v2657
    %2698 = vmatprep.subr.mxu0 0.0
    %2699 = vmatpush1.msra.mxu0 %v2656
    %2700 = vmatprep.subr.mxu0 0.0
    %2701 = vmatpush1.msra.mxu0 %v2655
    %2702 = vmatprep.subr.mxu0 0.0
    %2703 = vmatpush2.msra.mxu0 0.0
    %2704 = vmatprep.subr.mxu0 0.0
    %2705 = vmatpush2.msra.mxu0 0.0
    %2706 = vmatprep.subr.mxu0 0.0
    %2707 = vmatpush2.msra.mxu0 0.0
    %2708 = vmatprep.subr.mxu0 0.0
    %2709 = vmatpush2.msra.mxu0 0.0
    %2710 = vmatprep.subr.mxu0 0.0
    %2711 = vmatpush2.msra.mxu0 0.0
    %2712 = vmatprep.subr.mxu0 0.0
    %2713 = vmatpush2.msra.mxu0 0.0
    %2714 = vmatprep.subr.mxu0 0.0
    %2715 = vmatpush2.msra.mxu0 0.0
    %2716 = vmatprep.subr.mxu0 0.0
    %2717 = vmatpush2.msra.mxu0 0.0
    %2718 = vmatprep.subr.mxu0 0.0
    %2719 = vmatpush2.msra.mxu0 0.0
    %2720 = vmatprep.subr.mxu0 0.0
    %2721 = vmatpush2.msra.mxu0 0.0
    %2722 = vmatprep.subr.mxu0 0.0
    %2723 = vmatpush2.msra.mxu0 0.0
    %2724 = vmatprep.subr.mxu0 0.0
    %2725 = vmatpush2.msra.mxu0 0.0
    %2726 = vmatprep.subr.mxu0 0.0
    %2727 = vmatpush2.msra.mxu0 0.0
    %2728 = vmatprep.subr.mxu0 0.0
    %2729 = vmatpush2.msra.mxu0 0.0
    %2730 = vmatprep.subr.mxu0 0.0
    %2731 = vmatpush2.msra.mxu0 0.0
    %2732 = vmatprep.subr.mxu0 0.0
    %2733 = vmatpush2.msra.mxu0 0.0
    %2734 = vmatprep.mubr.f32.mxu0 0.0
    %2735 = vmatmul.mubr.f32.gmra.mxu0 %v2668
    %v2736 = vpop.f32.mrf.mxu0
    %v2737 = vadd.f32 %v2666, %v2736
    %v2738 = vpop.f32.mrf.mxu0
    %2739 = vdwg.mxu0
    %2740 = vst [vmem:[#allocation2] sm:$0x3] %v2737
    // Predicated region
    $region26: #{tpu_custom_call.1} parent=1 // pred_check
      _
    $region27: #{tpu_custom_call.1} parent=1 // pred_check_branch
      %2742 = sbr.rel (0) target = $region29
    $region28: #{tpu_custom_call.1} parent=1 // pred_region
      %s2744 = ssub.s32 32, 32
      %2745 = vsyncadd [#allocation3], %s2744
      %s2747 = sshll.u32 [#allocation2], 4
      %s2748 = int_to_ptr.vmem [resolvable:$true] %s2747
      %2750 = dma.vmem_to_hbm [thread:$0]  %s2748, 32, %s6, [#allocation3]
    $region29: #{tpu_custom_call.1} parent=1 // pred_fallthru
      _
    // Predicated region
    $region30: #{tpu_custom_call.1} parent=1 // pred_check
      _
    $region31: #{tpu_custom_call.1} parent=1 // pred_check_branch
      %2752 = sbr.rel (0) target = $region33
    $region32: #{tpu_custom_call.1} parent=1 // pred_region
      %2753 = dma.done [#allocation3], 32
    $region33: #{tpu_custom_call.1} parent=1 // pred_fallthru
      _
    %2754 = vsyncpa [#allocation3], 1

</llo_original>
